<compile_context>
chip_gen: v7x
topology: tpu7x:2x2x1
jax: 0.10.0
libtpu: 0.0.40
codegen_flags: <defaults>
</compile_context>

<pallas_src>
import jax
import jax.numpy as jnp
from jax.experimental import pallas as pl
from jax.experimental.pallas import tpu as pltpu


def _dwconv_kernel(top_ref, mid_ref, bot_ref, w_ref, b_ref, o_ref, *scratch):
    # top_ref: (1, 1,  W, C) input row just above the band (clamped at the top)
    # mid_ref: (1, TH, W, C) the TH input rows whose outputs this step produces
    # bot_ref: (1, 1,  W, C) input row just below the band (clamped at the bottom)
    # w_ref:   (9, C)        depthwise taps, row index = 3*kh + kw
    # b_ref:   (1, C)        bias
    # o_ref:   (1, TH, W, C) output block
    # scratch: optional (1, TH, W, C) f32 accumulator (only when o_ref is not f32)
    _, TH, W, C = o_ref.shape
    acc_ref = scratch[0] if scratch else o_ref     # f32 path accumulates in-place

    i = pl.program_id(1)
    last = pl.num_programs(1) - 1
    x_dtype = mid_ref.dtype

    # --- effective horizontal tap weights -------------------------------------
    # Zero the edge column of the left/right taps so the roll-wrapped column can
    # never contribute (replaces two full-band jnp.where masks with six (W, C)
    # ones; ~1/TH of a band pass total).
    col = jax.lax.broadcasted_iota(jnp.int32, (W, 1), 0)
    first_col = col == 0
    last_col = col == W - 1
    w = w_ref[...].astype(x_dtype)                 # (9, C); products stay in input dtype
    w_eff = []
    for k in range(9):
        kw = k % 3
        if kw == 0:                                # left tap: kills wrapped column 0
            w_eff.append(jnp.where(first_col, 0.0, w[k]))      # (W, C)
        elif kw == 2:                              # right tap: kills wrapped column W-1
            w_eff.append(jnp.where(last_col, 0.0, w[k]))       # (W, C)
        else:
            w_eff.append(w[k])                                  # (C,)

    def hcomb(c_src, l_src, r_src, kh):
        # 3-tap horizontal combination with kernel row `kh`.
        return (c_src * w_eff[3 * kh + 1]
                + l_src * w_eff[3 * kh + 0]
                + r_src * w_eff[3 * kh + 2])

    # --- horizontal shifts of the band (XLU slot, computed once) --------------
    mid = mid_ref[0]                               # (TH, W, C), no up-front f32 cast
    mid_l = pltpu.roll(mid, 1, axis=1)             # [., w] = mid[., w-1]  (col 0 wrapped)
    mid_r = pltpu.roll(mid, W - 1, axis=1)         # [., w] = mid[., w+1]  (col W-1 wrapped)

    bias = b_ref[...].astype(jnp.float32)          # (1, C)

    # kh = 1 (same input row) — also initializes the accumulator with the bias.
    acc_ref[0] = (hcomb(mid, mid_l, mid_r, 1) + bias).astype(acc_ref.dtype)

    if TH > 1:
        # kh = 0: input row r-1 comes from mid rows 0..TH-2 -> output rows 1..TH-1.
        up = hcomb(mid[:TH - 1], mid_l[:TH - 1], mid_r[:TH - 1], 0)
        acc_ref[0, 1:TH] = (acc_ref[0, 1:TH] + up).astype(acc_ref.dtype)
        # kh = 2: input row r+1 comes from mid rows 1..TH-1 -> output rows 0..TH-2.
        down = hcomb(mid[1:TH], mid_l[1:TH], mid_r[1:TH], 2)
        acc_ref[0, 0:TH - 1] = (acc_ref[0, 0:TH - 1] + down).astype(acc_ref.dtype)

    # --- halo rows: only added when they are inside the image -----------------
    # (pl.when instead of multiply-by-zero, so clamped NaN/Inf rows never leak.)
    @pl.when(i > 0)
    def _():
        t = top_ref[0]                             # (1, W, C) = input row above the band
        t_l = pltpu.roll(t, 1, axis=1)
        t_r = pltpu.roll(t, W - 1, axis=1)
        v = hcomb(t, t_l, t_r, 0)                  # kernel row kh=0
        acc_ref[0, 0:1] = (acc_ref[0, 0:1] + v).astype(acc_ref.dtype)

    @pl.when(i < last)
    def _():
        btm = bot_ref[0]                           # (1, W, C) = input row below the band
        b_l = pltpu.roll(btm, 1, axis=1)
        b_r = pltpu.roll(btm, W - 1, axis=1)
        v = hcomb(btm, b_l, b_r, 2)                # kernel row kh=2
        acc_ref[0, TH - 1:TH] = (acc_ref[0, TH - 1:TH] + v).astype(acc_ref.dtype)

    if scratch:                                    # low-precision output: one final cast
        o_ref[0] = acc_ref[0].astype(o_ref.dtype)


def _choose_row_tile(H, W, C, itemsize, batch, target_bytes):
    """Largest divisor of H whose (TH, W, C) band fits the per-block byte target,
    while keeping batch * nH >= 2 so the pipeline has depth and both v7x
    TensorCores / the megacore get work."""
    row_bytes = max(W * C * itemsize, 1)
    divisors = [d for d in range(1, H + 1) if H % d == 0]
    fitting = [d for d in divisors if d * row_bytes <= target_bytes]
    if not fitting:
        # A single row already exceeds the target (very wide W*C): halos then cost
        # a ~3x read amplification.
        # TODO(synk): carry the previous band's rows in VMEM scratch (H axis
        # "arbitrary") instead of re-fetching halos if this path ever matters.
        return 1
    th = max(fitting)
    if batch * (H // th) < 2:
        two_step = [d for d in fitting if H // d >= 2]
        if two_step:
            th = max(two_step)
    return th


def segformer_dwconv(hidden_states, height, width, weight, bias, *, row_tile=None):
    """Forward pass of SegformerDWConv.

    hidden_states: (B, seq_len, C) with seq_len == height * width
    weight:        (C, 1, 3, 3)   PyTorch depthwise Conv2d weight layout
    bias:          (C,)
    returns:       (B, seq_len, C)
    """
    B, seq_len, C = hidden_states.shape
    H, W = int(height), int(width)
    assert seq_len == H * W

    # transpose(1,2).view(B,C,H,W) -> conv -> flatten(2).transpose(1,2), done with a
    # channels-last kernel, composes to a plain reshape: x[b,h,w,c] = hs[b, h*W+w, c].
    x = hidden_states.reshape(B, H, W, C)
    w9 = jnp.transpose(weight.reshape(C, 9), (1, 0))           # (9, C), row = 3*kh + kw
    b2 = bias.reshape(1, C)

    # Per-generation VMEM budgeting: per-step footprint ~ (2x mid + 2x out
    # double-buffered) + mid_l + mid_r + fused temps (+ f32 scratch) ~ 8-12x the
    # block, so size the block from the real capacity (128 MiB v5e/v6e, 64 MiB v7x)
    # and set the scoped limit explicitly instead of relying on the 16/32 MiB default.
    try:
        vmem_cap = int(pltpu.get_tpu_info().vmem_capacity_bytes)
    except Exception:
        vmem_cap = 64 << 20
    vmem_budget = min(vmem_cap // 2, 40 << 20)
    target_block_bytes = max(1 << 20, vmem_budget // 12)

    if row_tile is None:
        TH = _choose_row_tile(H, W, C, x.dtype.itemsize, B, target_block_bytes)
    else:
        assert H % row_tile == 0
        TH = int(row_tile)
    nH = H // TH

    # NOTE: C maps to the 128-wide lane axis. Real Segformer MixFFN dims
    # (128/256/640/1024/2048) are lane-dense; C < 128 (tiny test configs) still
    # works but uses masked stores.

    use_scratch = x.dtype != jnp.float32        # accumulate in f32 scratch for bf16/fp8 I/O
    scratch_shapes = ([pltpu.VMEM((1, TH, W, C), jnp.float32)] if use_scratch else [])

    out = pl.pallas_call(
        _dwconv_kernel,
        out_shape=jax.ShapeDtypeStruct((B, H, W, C), hidden_states.dtype),
        grid_spec=pltpu.PrefetchScalarGridSpec(
            num_scalar_prefetch=0,
            grid=(B, nH),
            in_specs=[
                # 1-row top halo (clamped at the top edge; skipped there via pl.when)
                pl.BlockSpec((1, 1, W, C),
                             lambda b, i: (b, jnp.maximum(i * TH - 1, 0), 0, 0)),
                # main TH-row band
                pl.BlockSpec((1, TH, W, C), lambda b, i: (b, i, 0, 0)),
                # 1-row bottom halo (clamped at the bottom edge; skipped there via pl.when)
                pl.BlockSpec((1, 1, W, C),
                             lambda b, i: (b, jnp.minimum(i * TH + TH, H - 1), 0, 0)),
                # grid-invariant weights / bias stay resident in VMEM
                pl.BlockSpec((9, C), lambda b, i: (0, 0)),
                pl.BlockSpec((1, C), lambda b, i: (0, 0)),
            ],
            out_specs=pl.BlockSpec((1, TH, W, C), lambda b, i: (b, i, 0, 0)),
            scratch_shapes=scratch_shapes,
        ),
        compiler_params=pltpu.CompilerParams(
            dimension_semantics=("parallel", "parallel"),
            vmem_limit_bytes=int(vmem_budget)),
    )(x, x, x, w9, b2)

    # NHWC -> NCHW -> flatten(2) -> transpose(1,2) is again a plain reshape.
    return out.reshape(B, seq_len, C)


def _reference(hidden_states, height, width, weight, bias):
    """Pure-JAX reference using a lax depthwise conv (correctness check)."""
    B, seq_len, C = hidden_states.shape
    x = hidden_states.reshape(B, height, width, C)             # NHWC
    k = jnp.transpose(weight, (2, 3, 1, 0))                    # (3, 3, 1, C) HWIO
    y = jax.lax.conv_general_dilated(
        x, k, window_strides=(1, 1), padding=((1, 1), (1, 1)),
        dimension_numbers=("NHWC", "HWIO", "NHWC"), feature_group_count=C,
    ) + bias
    return y.reshape(B, seq_len, C)


if __name__ == "__main__":
    key = jax.random.PRNGKey(0)
    k_x, k_w, k_b = jax.random.split(key, 3)

    # Small but representative: B=2, C=32 channels, 16x16 spatial -> seq=256.
    B, C, H, W = 2, 32, 16, 16
    seq_len = H * W

    hidden_states = jax.random.normal(k_x, (B, seq_len, C), dtype=jnp.float32)
    # Deterministic synthetic params in the PyTorch Conv2d(groups=dim) layout.
    bound = 1.0 / (9.0 ** 0.5)
    weight = jax.random.uniform(k_w, (C, 1, 3, 3), jnp.float32, -bound, bound)
    bias = jax.random.uniform(k_b, (C,), jnp.float32, -bound, bound)

    ref = _reference(hidden_states, H, W, weight, bias)

    # Default tiling (whole image fits one band here; grid = (B, 1)).
    out = jax.block_until_ready(segformer_dwconv(hidden_states, H, W, weight, bias))
    assert out.shape == (B, seq_len, C)
    assert jnp.allclose(out, ref, atol=1e-5, rtol=1e-5), "mismatch (default tiling)"

    # Forced multi-band tiling: exercises the top/bottom halo pl.when paths and
    # the row-shifted in-place accumulation across band boundaries.
    out_tiled = jax.block_until_ready(
        segformer_dwconv(hidden_states, H, W, weight, bias, row_tile=4))
    assert jnp.allclose(out_tiled, ref, atol=1e-5, rtol=1e-5), "mismatch (row_tile=4)"

    # Degenerate 1-row bands (all vertical taps come from the halos).
    out_rows = jax.block_until_ready(
        segformer_dwconv(hidden_states, H, W, weight, bias, row_tile=1))
    assert jnp.allclose(out_rows, ref, atol=1e-5, rtol=1e-5), "mismatch (row_tile=1)"

    print("KERNEL_OK")
</pallas_src>

<mosaic_0001>
module attributes {stable_mosaic.version = 11 : i64} {
  func.func @_dwconv_kernel(%arg0: i32, %arg1: i32, %arg2: memref<1x1x16x32xf32, #tpu.memory_space<vmem>>, %arg3: memref<1x16x16x32xf32, #tpu.memory_space<vmem>>, %arg4: memref<1x1x16x32xf32, #tpu.memory_space<vmem>>, %arg5: memref<9x32xf32, #tpu.memory_space<vmem>>, %arg6: memref<1x32xf32, #tpu.memory_space<vmem>>, %arg7: memref<1x16x16x32xf32, #tpu.memory_space<vmem>>) attributes {dimension_semantics = [#tpu.dimension_semantics<parallel>, #tpu.dimension_semantics<parallel>], iteration_bounds = array<i64: 2, 1>, scalar_prefetch = 0 : i64, scratch_operands = 0 : i64, tpu.core_type = #tpu.core_type<tc>, window_params = [{transform_indices = @transform_0, window_bounds = array<i64: 1, 1, 16, 32>}, {transform_indices = @transform_1, window_bounds = array<i64: 1, 16, 16, 32>}, {transform_indices = @transform_2, window_bounds = array<i64: 1, 1, 16, 32>}, {pipeline_mode = #tpu.pipeline_mode<synchronous>, transform_indices = @transform_3, window_bounds = array<i64: 9, 32>}, {pipeline_mode = #tpu.pipeline_mode<synchronous>, transform_indices = @transform_4, window_bounds = array<i64: 1, 32>}, {transform_indices = @transform_5, window_bounds = array<i64: 1, 16, 16, 32>}]} {
    %0 = tpu.iota {dimensions = array<i32: 0>} : vector<16x1xi32>
    %c0_i32 = arith.constant 0 : i32
    %1 = vector.broadcast %c0_i32 : i32 to vector<16x1xi32>
    %2 = arith.cmpi eq, %0, %1 : vector<16x1xi32>
    %c15_i32 = arith.constant 15 : i32
    %3 = vector.broadcast %c15_i32 : i32 to vector<16x1xi32>
    %4 = arith.cmpi eq, %0, %3 : vector<16x1xi32>
    %c0 = arith.constant 0 : index
    %c0_0 = arith.constant 0 : index
    %5 = vector.load %arg5[%c0, %c0_0] : memref<9x32xf32, #tpu.memory_space<vmem>>, vector<9x32xf32>
    %6 = vector.extract_strided_slice %5 {offsets = [0, 0], sizes = [1, 32], strides = [1, 1]} : vector<9x32xf32> to vector<1x32xf32>
    %7 = vector.shape_cast %6 : vector<1x32xf32> to vector<32xf32>
    %cst = arith.constant 0.000000e+00 : f32
    %8 = vector.shape_cast %2 : vector<16x1xi1> to vector<16x1xi1>
    %9 = vector.broadcast %8 : vector<16x1xi1> to vector<16x32xi1>
    %10 = vector.broadcast %cst : f32 to vector<16x32xf32>
    %11 = vector.shape_cast %7 : vector<32xf32> to vector<1x32xf32>
    %12 = vector.broadcast %11 : vector<1x32xf32> to vector<16x32xf32>
    %13 = arith.select %9, %10, %12 : vector<16x32xi1>, vector<16x32xf32>
    %14 = vector.extract_strided_slice %5 {offsets = [1, 0], sizes = [1, 32], strides = [1, 1]} : vector<9x32xf32> to vector<1x32xf32>
    %15 = vector.shape_cast %14 : vector<1x32xf32> to vector<32xf32>
    %16 = vector.extract_strided_slice %5 {offsets = [2, 0], sizes = [1, 32], strides = [1, 1]} : vector<9x32xf32> to vector<1x32xf32>
    %17 = vector.shape_cast %16 : vector<1x32xf32> to vector<32xf32>
    %cst_1 = arith.constant 0.000000e+00 : f32
    %18 = vector.shape_cast %4 : vector<16x1xi1> to vector<16x1xi1>
    %19 = vector.broadcast %18 : vector<16x1xi1> to vector<16x32xi1>
    %20 = vector.broadcast %cst_1 : f32 to vector<16x32xf32>
    %21 = vector.shape_cast %17 : vector<32xf32> to vector<1x32xf32>
    %22 = vector.broadcast %21 : vector<1x32xf32> to vector<16x32xf32>
    %23 = arith.select %19, %20, %22 : vector<16x32xi1>, vector<16x32xf32>
    %24 = vector.extract_strided_slice %5 {offsets = [3, 0], sizes = [1, 32], strides = [1, 1]} : vector<9x32xf32> to vector<1x32xf32>
    %25 = vector.shape_cast %24 : vector<1x32xf32> to vector<32xf32>
    %cst_2 = arith.constant 0.000000e+00 : f32
    %26 = vector.shape_cast %2 : vector<16x1xi1> to vector<16x1xi1>
    %27 = vector.broadcast %26 : vector<16x1xi1> to vector<16x32xi1>
    %28 = vector.broadcast %cst_2 : f32 to vector<16x32xf32>
    %29 = vector.shape_cast %25 : vector<32xf32> to vector<1x32xf32>
    %30 = vector.broadcast %29 : vector<1x32xf32> to vector<16x32xf32>
    %31 = arith.select %27, %28, %30 : vector<16x32xi1>, vector<16x32xf32>
    %32 = vector.extract_strided_slice %5 {offsets = [4, 0], sizes = [1, 32], strides = [1, 1]} : vector<9x32xf32> to vector<1x32xf32>
    %33 = vector.shape_cast %32 : vector<1x32xf32> to vector<32xf32>
    %34 = vector.extract_strided_slice %5 {offsets = [5, 0], sizes = [1, 32], strides = [1, 1]} : vector<9x32xf32> to vector<1x32xf32>
    %35 = vector.shape_cast %34 : vector<1x32xf32> to vector<32xf32>
    %cst_3 = arith.constant 0.000000e+00 : f32
    %36 = vector.shape_cast %4 : vector<16x1xi1> to vector<16x1xi1>
    %37 = vector.broadcast %36 : vector<16x1xi1> to vector<16x32xi1>
    %38 = vector.broadcast %cst_3 : f32 to vector<16x32xf32>
    %39 = vector.shape_cast %35 : vector<32xf32> to vector<1x32xf32>
    %40 = vector.broadcast %39 : vector<1x32xf32> to vector<16x32xf32>
    %41 = arith.select %37, %38, %40 : vector<16x32xi1>, vector<16x32xf32>
    %42 = vector.extract_strided_slice %5 {offsets = [6, 0], sizes = [1, 32], strides = [1, 1]} : vector<9x32xf32> to vector<1x32xf32>
    %43 = vector.shape_cast %42 : vector<1x32xf32> to vector<32xf32>
    %cst_4 = arith.constant 0.000000e+00 : f32
    %44 = vector.shape_cast %2 : vector<16x1xi1> to vector<16x1xi1>
    %45 = vector.broadcast %44 : vector<16x1xi1> to vector<16x32xi1>
    %46 = vector.broadcast %cst_4 : f32 to vector<16x32xf32>
    %47 = vector.shape_cast %43 : vector<32xf32> to vector<1x32xf32>
    %48 = vector.broadcast %47 : vector<1x32xf32> to vector<16x32xf32>
    %49 = arith.select %45, %46, %48 : vector<16x32xi1>, vector<16x32xf32>
    %50 = vector.extract_strided_slice %5 {offsets = [7, 0], sizes = [1, 32], strides = [1, 1]} : vector<9x32xf32> to vector<1x32xf32>
    %51 = vector.shape_cast %50 : vector<1x32xf32> to vector<32xf32>
    %52 = vector.extract_strided_slice %5 {offsets = [8, 0], sizes = [1, 32], strides = [1, 1]} : vector<9x32xf32> to vector<1x32xf32>
    %53 = vector.shape_cast %52 : vector<1x32xf32> to vector<32xf32>
    %cst_5 = arith.constant 0.000000e+00 : f32
    %54 = vector.shape_cast %4 : vector<16x1xi1> to vector<16x1xi1>
    %55 = vector.broadcast %54 : vector<16x1xi1> to vector<16x32xi1>
    %56 = vector.broadcast %cst_5 : f32 to vector<16x32xf32>
    %57 = vector.shape_cast %53 : vector<32xf32> to vector<1x32xf32>
    %58 = vector.broadcast %57 : vector<1x32xf32> to vector<16x32xf32>
    %59 = arith.select %55, %56, %58 : vector<16x32xi1>, vector<16x32xf32>
    %c0_6 = arith.constant 0 : index
    %c0_7 = arith.constant 0 : index
    %c0_8 = arith.constant 0 : index
    %c0_9 = arith.constant 0 : index
    %60 = vector.load %arg3[%c0_6, %c0_7, %c0_8, %c0_9] : memref<1x16x16x32xf32, #tpu.memory_space<vmem>>, vector<1x16x16x32xf32>
    %61 = vector.shape_cast %60 : vector<1x16x16x32xf32> to vector<16x16x32xf32>
    %c1_i32 = arith.constant 1 : i32
    %62 = tpu.dynamic_rotate %61 by %c1_i32 dim 1 : vector<16x16x32xf32>, i32 -> vector<16x16x32xf32>
    %c15_i32_10 = arith.constant 15 : i32
    %63 = tpu.dynamic_rotate %61 by %c15_i32_10 dim 1 : vector<16x16x32xf32>, i32 -> vector<16x16x32xf32>
    %c0_11 = arith.constant 0 : index
    %c0_12 = arith.constant 0 : index
    %64 = vector.load %arg6[%c0_11, %c0_12] : memref<1x32xf32, #tpu.memory_space<vmem>>, vector<1x32xf32>
    %65 = vector.shape_cast %33 : vector<32xf32> to vector<1x1x32xf32>
    %66 = vector.broadcast %65 : vector<1x1x32xf32> to vector<16x16x32xf32>
    %67 = arith.mulf %61, %66 : vector<16x16x32xf32>
    %68 = vector.shape_cast %31 : vector<16x32xf32> to vector<1x16x32xf32>
    %69 = vector.broadcast %68 : vector<1x16x32xf32> to vector<16x16x32xf32>
    %70 = arith.mulf %62, %69 : vector<16x16x32xf32>
    %71 = arith.addf %67, %70 : vector<16x16x32xf32>
    %72 = vector.shape_cast %41 : vector<16x32xf32> to vector<1x16x32xf32>
    %73 = vector.broadcast %72 : vector<1x16x32xf32> to vector<16x16x32xf32>
    %74 = arith.mulf %63, %73 : vector<16x16x32xf32>
    %75 = arith.addf %71, %74 : vector<16x16x32xf32>
    %76 = vector.shape_cast %64 : vector<1x32xf32> to vector<1x1x32xf32>
    %77 = vector.broadcast %76 : vector<1x1x32xf32> to vector<16x16x32xf32>
    %78 = arith.addf %75, %77 : vector<16x16x32xf32>
    %c0_13 = arith.constant 0 : index
    %c0_14 = arith.constant 0 : index
    %c0_15 = arith.constant 0 : index
    %c0_16 = arith.constant 0 : index
    %79 = vector.load %arg7[%c0_13, %c0_14, %c0_15, %c0_16] : memref<1x16x16x32xf32, #tpu.memory_space<vmem>>, vector<1x16x16x32xf32>
    %80 = vector.shape_cast %79 : vector<1x16x16x32xf32> to vector<16x16x32xf32>
    %81 = vector.shape_cast %78 : vector<16x16x32xf32> to vector<1x16x16x32xf32>
    tpu.vector_store %arg7[%c0_13, %c0_14, %c0_15, %c0_16], %81 {strides = array<i32>} : memref<1x16x16x32xf32, #tpu.memory_space<vmem>>, vector<1x16x16x32xf32>,
    %82 = vector.extract_strided_slice %61 {offsets = [0, 0, 0], sizes = [15, 16, 32], strides = [1, 1, 1]} : vector<16x16x32xf32> to vector<15x16x32xf32>
    %83 = vector.extract_strided_slice %62 {offsets = [0, 0, 0], sizes = [15, 16, 32], strides = [1, 1, 1]} : vector<16x16x32xf32> to vector<15x16x32xf32>
    %84 = vector.extract_strided_slice %63 {offsets = [0, 0, 0], sizes = [15, 16, 32], strides = [1, 1, 1]} : vector<16x16x32xf32> to vector<15x16x32xf32>
    %85 = vector.shape_cast %15 : vector<32xf32> to vector<1x1x32xf32>
    %86 = vector.broadcast %85 : vector<1x1x32xf32> to vector<15x16x32xf32>
    %87 = arith.mulf %82, %86 : vector<15x16x32xf32>
    %88 = vector.shape_cast %13 : vector<16x32xf32> to vector<1x16x32xf32>
    %89 = vector.broadcast %88 : vector<1x16x32xf32> to vector<15x16x32xf32>
    %90 = arith.mulf %83, %89 : vector<15x16x32xf32>
    %91 = arith.addf %87, %90 : vector<15x16x32xf32>
    %92 = vector.shape_cast %23 : vector<16x32xf32> to vector<1x16x32xf32>
    %93 = vector.broadcast %92 : vector<1x16x32xf32> to vector<15x16x32xf32>
    %94 = arith.mulf %84, %93 : vector<15x16x32xf32>
    %95 = arith.addf %91, %94 : vector<15x16x32xf32>
    %c0_17 = arith.constant 0 : index
    %c1 = arith.constant 1 : index
    %c0_18 = arith.constant 0 : index
    %c0_19 = arith.constant 0 : index
    %96 = vector.load %arg7[%c0_17, %c1, %c0_18, %c0_19] : memref<1x16x16x32xf32, #tpu.memory_space<vmem>>, vector<1x15x16x32xf32>
    %97 = vector.shape_cast %96 : vector<1x15x16x32xf32> to vector<15x16x32xf32>
    %98 = arith.addf %97, %95 : vector<15x16x32xf32>
    %c0_20 = arith.constant 0 : index
    %c1_21 = arith.constant 1 : index
    %c0_22 = arith.constant 0 : index
    %c0_23 = arith.constant 0 : index
    %99 = vector.load %arg7[%c0_20, %c1_21, %c0_22, %c0_23] : memref<1x16x16x32xf32, #tpu.memory_space<vmem>>, vector<1x15x16x32xf32>
    %100 = vector.shape_cast %99 : vector<1x15x16x32xf32> to vector<15x16x32xf32>
    %101 = vector.shape_cast %98 : vector<15x16x32xf32> to vector<1x15x16x32xf32>
    tpu.vector_store %arg7[%c0_20, %c1_21, %c0_22, %c0_23], %101 {strides = array<i32>} : memref<1x16x16x32xf32, #tpu.memory_space<vmem>>, vector<1x15x16x32xf32>,
    %102 = vector.extract_strided_slice %61 {offsets = [1, 0, 0], sizes = [15, 16, 32], strides = [1, 1, 1]} : vector<16x16x32xf32> to vector<15x16x32xf32>
    %103 = vector.extract_strided_slice %62 {offsets = [1, 0, 0], sizes = [15, 16, 32], strides = [1, 1, 1]} : vector<16x16x32xf32> to vector<15x16x32xf32>
    %104 = vector.extract_strided_slice %63 {offsets = [1, 0, 0], sizes = [15, 16, 32], strides = [1, 1, 1]} : vector<16x16x32xf32> to vector<15x16x32xf32>
    %105 = vector.shape_cast %51 : vector<32xf32> to vector<1x1x32xf32>
    %106 = vector.broadcast %105 : vector<1x1x32xf32> to vector<15x16x32xf32>
    %107 = arith.mulf %102, %106 : vector<15x16x32xf32>
    %108 = vector.shape_cast %49 : vector<16x32xf32> to vector<1x16x32xf32>
    %109 = vector.broadcast %108 : vector<1x16x32xf32> to vector<15x16x32xf32>
    %110 = arith.mulf %103, %109 : vector<15x16x32xf32>
    %111 = arith.addf %107, %110 : vector<15x16x32xf32>
    %112 = vector.shape_cast %59 : vector<16x32xf32> to vector<1x16x32xf32>
    %113 = vector.broadcast %112 : vector<1x16x32xf32> to vector<15x16x32xf32>
    %114 = arith.mulf %104, %113 : vector<15x16x32xf32>
    %115 = arith.addf %111, %114 : vector<15x16x32xf32>
    %c0_24 = arith.constant 0 : index
    %c0_25 = arith.constant 0 : index
    %c0_26 = arith.constant 0 : index
    %c0_27 = arith.constant 0 : index
    %116 = vector.load %arg7[%c0_24, %c0_25, %c0_26, %c0_27] : memref<1x16x16x32xf32, #tpu.memory_space<vmem>>, vector<1x15x16x32xf32>
    %117 = vector.shape_cast %116 : vector<1x15x16x32xf32> to vector<15x16x32xf32>
    %118 = arith.addf %117, %115 : vector<15x16x32xf32>
    %c0_28 = arith.constant 0 : index
    %c0_29 = arith.constant 0 : index
    %c0_30 = arith.constant 0 : index
    %c0_31 = arith.constant 0 : index
    %119 = vector.load %arg7[%c0_28, %c0_29, %c0_30, %c0_31] : memref<1x16x16x32xf32, #tpu.memory_space<vmem>>, vector<1x15x16x32xf32>
    %120 = vector.shape_cast %119 : vector<1x15x16x32xf32> to vector<15x16x32xf32>
    %121 = vector.shape_cast %118 : vector<15x16x32xf32> to vector<1x15x16x32xf32>
    tpu.vector_store %arg7[%c0_28, %c0_29, %c0_30, %c0_31], %121 {strides = array<i32>} : memref<1x16x16x32xf32, #tpu.memory_space<vmem>>, vector<1x15x16x32xf32>,
    %c0_i32_32 = arith.constant 0 : i32
    %122 = arith.cmpi sgt, %arg1, %c0_i32_32 : i32
    %123 = arith.extui %122 : i1 to i32
    %c0_i32_33 = arith.constant 0 : i32
    %124 = arith.cmpi ne, %123, %c0_i32_33 : i32
    scf.if %124 {
      %c0_36 = arith.constant 0 : index
      %c0_37 = arith.constant 0 : index
      %c0_38 = arith.constant 0 : index
      %c0_39 = arith.constant 0 : index
      %128 = vector.load %arg2[%c0_36, %c0_37, %c0_38, %c0_39] : memref<1x1x16x32xf32, #tpu.memory_space<vmem>>, vector<1x1x16x32xf32>
      %129 = vector.shape_cast %128 : vector<1x1x16x32xf32> to vector<1x16x32xf32>
      %c1_i32_40 = arith.constant 1 : i32
      %130 = tpu.dynamic_rotate %129 by %c1_i32_40 dim 1 : vector<1x16x32xf32>, i32 -> vector<1x16x32xf32>
      %c15_i32_41 = arith.constant 15 : i32
      %131 = tpu.dynamic_rotate %129 by %c15_i32_41 dim 1 : vector<1x16x32xf32>, i32 -> vector<1x16x32xf32>
      %132 = vector.shape_cast %15 : vector<32xf32> to vector<1x1x32xf32>
      %133 = vector.broadcast %132 : vector<1x1x32xf32> to vector<1x16x32xf32>
      %134 = arith.mulf %129, %133 : vector<1x16x32xf32>
      %135 = vector.shape_cast %13 : vector<16x32xf32> to vector<1x16x32xf32>
      %136 = arith.mulf %130, %135 : vector<1x16x32xf32>
      %137 = arith.addf %134, %136 : vector<1x16x32xf32>
      %138 = vector.shape_cast %23 : vector<16x32xf32> to vector<1x16x32xf32>
      %139 = arith.mulf %131, %138 : vector<1x16x32xf32>
      %140 = arith.addf %137, %139 : vector<1x16x32xf32>
      %c0_42 = arith.constant 0 : index
      %c0_43 = arith.constant 0 : index
      %c0_44 = arith.constant 0 : index
      %c0_45 = arith.constant 0 : index
      %141 = vector.load %arg7[%c0_42, %c0_43, %c0_44, %c0_45] : memref<1x16x16x32xf32, #tpu.memory_space<vmem>>, vector<1x1x16x32xf32>
      %142 = vector.shape_cast %141 : vector<1x1x16x32xf32> to vector<1x16x32xf32>
      %143 = arith.addf %142, %140 : vector<1x16x32xf32>
      %c0_46 = arith.constant 0 : index
      %c0_47 = arith.constant 0 : index
      %c0_48 = arith.constant 0 : index
      %c0_49 = arith.constant 0 : index
      %144 = vector.load %arg7[%c0_46, %c0_47, %c0_48, %c0_49] : memref<1x16x16x32xf32, #tpu.memory_space<vmem>>, vector<1x1x16x32xf32>
      %145 = vector.shape_cast %144 : vector<1x1x16x32xf32> to vector<1x16x32xf32>
      %146 = vector.shape_cast %143 : vector<1x16x32xf32> to vector<1x1x16x32xf32>
      tpu.vector_store %arg7[%c0_46, %c0_47, %c0_48, %c0_49], %146 {strides = array<i32>} : memref<1x16x16x32xf32, #tpu.memory_space<vmem>>, vector<1x1x16x32xf32>,
    } else {
    }
    %c0_i32_34 = arith.constant 0 : i32
    %125 = arith.cmpi slt, %arg1, %c0_i32_34 : i32
    %126 = arith.extui %125 : i1 to i32
    %c0_i32_35 = arith.constant 0 : i32
    %127 = arith.cmpi ne, %126, %c0_i32_35 : i32
    scf.if %127 {
      %c0_36 = arith.constant 0 : index
      %c0_37 = arith.constant 0 : index
      %c0_38 = arith.constant 0 : index
      %c0_39 = arith.constant 0 : index
      %128 = vector.load %arg4[%c0_36, %c0_37, %c0_38, %c0_39] : memref<1x1x16x32xf32, #tpu.memory_space<vmem>>, vector<1x1x16x32xf32>
      %129 = vector.shape_cast %128 : vector<1x1x16x32xf32> to vector<1x16x32xf32>
      %c1_i32_40 = arith.constant 1 : i32
      %130 = tpu.dynamic_rotate %129 by %c1_i32_40 dim 1 : vector<1x16x32xf32>, i32 -> vector<1x16x32xf32>
      %c15_i32_41 = arith.constant 15 : i32
      %131 = tpu.dynamic_rotate %129 by %c15_i32_41 dim 1 : vector<1x16x32xf32>, i32 -> vector<1x16x32xf32>
      %132 = vector.shape_cast %51 : vector<32xf32> to vector<1x1x32xf32>
      %133 = vector.broadcast %132 : vector<1x1x32xf32> to vector<1x16x32xf32>
      %134 = arith.mulf %129, %133 : vector<1x16x32xf32>
      %135 = vector.shape_cast %49 : vector<16x32xf32> to vector<1x16x32xf32>
      %136 = arith.mulf %130, %135 : vector<1x16x32xf32>
      %137 = arith.addf %134, %136 : vector<1x16x32xf32>
      %138 = vector.shape_cast %59 : vector<16x32xf32> to vector<1x16x32xf32>
      %139 = arith.mulf %131, %138 : vector<1x16x32xf32>
      %140 = arith.addf %137, %139 : vector<1x16x32xf32>
      %c0_42 = arith.constant 0 : index
      %c15 = arith.constant 15 : index
      %c0_43 = arith.constant 0 : index
      %c0_44 = arith.constant 0 : index
      %141 = vector.load %arg7[%c0_42, %c15, %c0_43, %c0_44] : memref<1x16x16x32xf32, #tpu.memory_space<vmem>>, vector<1x1x16x32xf32>
      %142 = vector.shape_cast %141 : vector<1x1x16x32xf32> to vector<1x16x32xf32>
      %143 = arith.addf %142, %140 : vector<1x16x32xf32>
      %c0_45 = arith.constant 0 : index
      %c15_46 = arith.constant 15 : index
      %c0_47 = arith.constant 0 : index
      %c0_48 = arith.constant 0 : index
      %144 = vector.load %arg7[%c0_45, %c15_46, %c0_47, %c0_48] : memref<1x16x16x32xf32, #tpu.memory_space<vmem>>, vector<1x1x16x32xf32>
      %145 = vector.shape_cast %144 : vector<1x1x16x32xf32> to vector<1x16x32xf32>
      %146 = vector.shape_cast %143 : vector<1x16x32xf32> to vector<1x1x16x32xf32>
      tpu.vector_store %arg7[%c0_45, %c15_46, %c0_47, %c0_48], %146 {strides = array<i32>} : memref<1x16x16x32xf32, #tpu.memory_space<vmem>>, vector<1x1x16x32xf32>,
    } else {
    }
    return
  }
  func.func @transform_0(%arg0: i32, %arg1: i32) -> (i32, i32, i32, i32) {
    %c16_i32 = arith.constant 16 : i32
    %0 = arith.muli %arg1, %c16_i32 : i32
    %c1_i32 = arith.constant 1 : i32
    %1 = arith.subi %0, %c1_i32 : i32
    %c0_i32 = arith.constant 0 : i32
    %2 = arith.maxsi %1, %c0_i32 : i32
    %c0_i32_0 = arith.constant 0 : i32
    %c0_i32_1 = arith.constant 0 : i32
    %c0_i32_2 = arith.constant 0 : i32
    return %arg0, %2, %c0_i32_0, %c0_i32_1 : i32, i32, i32, i32
  }
  func.func @transform_1(%arg0: i32, %arg1: i32) -> (i32, i32, i32, i32) {
    %c0_i32 = arith.constant 0 : i32
    %c0_i32_0 = arith.constant 0 : i32
    %c0_i32_1 = arith.constant 0 : i32
    return %arg0, %arg1, %c0_i32, %c0_i32_0 : i32, i32, i32, i32
  }
  func.func @transform_2(%arg0: i32, %arg1: i32) -> (i32, i32, i32, i32) {
    %c16_i32 = arith.constant 16 : i32
    %0 = arith.muli %arg1, %c16_i32 : i32
    %c16_i32_0 = arith.constant 16 : i32
    %1 = arith.addi %0, %c16_i32_0 : i32
    %c15_i32 = arith.constant 15 : i32
    %2 = arith.minsi %1, %c15_i32 : i32
    %c0_i32 = arith.constant 0 : i32
    %c0_i32_1 = arith.constant 0 : i32
    %c0_i32_2 = arith.constant 0 : i32
    return %arg0, %2, %c0_i32, %c0_i32_1 : i32, i32, i32, i32
  }
  func.func @transform_3(%arg0: i32, %arg1: i32) -> (i32, i32) {
    %c0_i32 = arith.constant 0 : i32
    %c0_i32_0 = arith.constant 0 : i32
    %c0_i32_1 = arith.constant 0 : i32
    return %c0_i32, %c0_i32_0 : i32, i32
  }
  func.func @transform_4(%arg0: i32, %arg1: i32) -> (i32, i32) {
    %c0_i32 = arith.constant 0 : i32
    %c0_i32_0 = arith.constant 0 : i32
    %c0_i32_1 = arith.constant 0 : i32
    return %c0_i32, %c0_i32_0 : i32, i32
  }
  func.func @transform_5(%arg0: i32, %arg1: i32) -> (i32, i32, i32, i32) {
    %c0_i32 = arith.constant 0 : i32
    %c0_i32_0 = arith.constant 0 : i32
    %c0_i32_1 = arith.constant 0 : i32
    return %arg0, %arg1, %c0_i32, %c0_i32_0 : i32, i32, i32, i32
  }
}

</mosaic_0001>

<llo_original>
// kernel: tpu_custom_call.1
$region0: #{tpu_custom_call.1}
  #allocation0 [shape = 'u32[]', space=smem, size = 0x4, offset = 0x4, fixed_abs, tag = 'smem constant byte address 0x4 - core index']
  #allocation1 [shape = 'u32[144,128]{1,0:T(1,128)}', space=vmem, size = 0x12000, scoped, tag = 'internal scratch']
  %s0 = inlined_call_operand.hbm [shape: f32[2,16,16,32], index: 0, kind: input, shape index: {}]
  %s1 = inlined_call_operand.hbm [shape: f32[2,16,16,32], index: 1, kind: input, shape index: {}]
  %s2 = inlined_call_operand.hbm [shape: f32[2,16,16,32], index: 2, kind: input, shape index: {}]
  %s3 = inlined_call_operand.hbm [shape: f32[9,32], index: 3, kind: input, shape index: {}]
  %s4 = inlined_call_operand.vmem [shape: f32[1,32], index: 4, kind: input, shape index: {}]
  %s5 = inlined_call_operand.hbm [shape: f32[2,16,16,32], index: 5, kind: output, shape index: {}]
  %s6 = sld [smem:[#allocation0]]
  $region77: #{tpu_custom_call.1} parent=0
    _
  %s8 = ssub.s32 1, %s6
  %s9 = scalar_select 0, %s8, %s6
  $region1: #{tpu_custom_call.1} parent=0
    #allocation2 [shape = 'u8[16384]{0}', space=vmem, size = 0x4000, scoped, tag = 'input window, operand 0']
    #allocation3 [shape = 's32[2]{0}', space=sflag, size = 0x8, scoped, tag = 'scoped memory for tpu_custom_call.1']
    #allocation4 [shape = 's32[2]{0}', space=sflag, size = 0x8, scoped, tag = 'scoped memory for tpu_custom_call.1']
    #allocation5 [shape = 'u8[262144]{0}', space=vmem, size = 0x40000, scoped, tag = 'input window, operand 1']
    #allocation6 [shape = 's32[2]{0}', space=sflag, size = 0x8, scoped, tag = 'scoped memory for tpu_custom_call.1']
    #allocation7 [shape = 'u8[16384]{0}', space=vmem, size = 0x4000, scoped, tag = 'input window, operand 2']
    #allocation8 [shape = 'u8[8192]{0}', space=vmem, size = 0x2000, scoped, tag = 'input window, operand 3, single buffered']
    #allocation9 [shape = 's32[1]{0}', space=sflag, size = 0x4, scoped, tag = 'scoped memory for tpu_custom_call.1']
    #allocation10 [shape = 'u8[262144]{0}', space=vmem, size = 0x40000, scoped, tag = 'output window, operand 0']
    %10 = vsyncpa [#allocation3], 0
    %s11 = scalar_lea.sflag [#allocation3], 1
    %12 = vsyncpa %s11, 0
    %13 = vsyncpa [#allocation6], 0
    %s14 = scalar_lea.sflag [#allocation6], 1
    %15 = vsyncpa %s14, 0
    %16 = vsyncpa [#allocation9], 0
    %17 = vsyncpa [#allocation4], 0
    %s18 = scalar_lea.sflag [#allocation4], 1
    %19 = vsyncpa %s18, 0
    loop: start=0, step=1, limit=4
    $region2: #{tpu_custom_call.1} parent=1 // loop_pre_header
      _
    $region3: #{tpu_custom_call.1} parent=1 // loop_header
      %s21 = sphi 0, %s25
      %p22 = scmp.ge.s32.totalorder %s21, 4
      %s28 = sphi 0, %s40
      %s29 = sphi 0, %s36
      %s30 = sphi 0, %s28
      %s31 = sphi 0, %s29
      %s32 = sphi 0, %s30
      %s33 = sphi 0, %s31
      %s53 = sphi 0, %s55
      %s56 = sphi 0, %s53
      %s57 = sphi 0, %s56
      %s73 = sphi 0, %s57
      %s81 = sphi 0, %s83
      %s84 = sphi 0, %s81
      %s85 = sphi 0, %s84
      %s101 = sphi 0, %s85
      %s117 = sphi 0, %s119
      %s120 = sphi 0, %s117
      %s121 = sphi 0, %s120
      %s137 = sphi 0, %s121
      %s141 = sphi 0, %s141
      %s143 = sphi 0, %s141
      %s144 = sphi 0, %s143
      %s158 = sphi 0, %s144
      %s162 = sphi 0, %s162
      %s164 = sphi 0, %s162
      %s165 = sphi 0, %s164
      %s179 = sphi 0, %s165
      %s187 = sphi 0, %s189
      %s190 = sphi 0, %s187
      %s191 = sphi 0, %s190
      %s207 = sphi 0, %s191
    $region4: #{tpu_custom_call.1} parent=1 // loop_header_branch
      %24 = sbr.rel (%p22) target = $region8
    $region5: #{tpu_custom_call.1} parent=1 // loop_body
      %s26 = ssub.s32 %s21, 1
      %s27 = ssub.s32 %s21, 2
      %s34 = sadd.s32 1, %s29
      %p35 = scmp.ge.s32.totalorder %s34, 1
      %s36 = scalar_select %p35, 0, %s34
      %s37 = sadd.s32 1, %s28
      %s38 = scalar_select %p35, %s37, %s28
      %p39 = scmp.ge.s32.totalorder %s38, 2
      %s40 = scalar_select %p39, 0, %s38
      %s41 = smul.u32 %s29, 16
      %s42 = ssub.s32 %s41, 1
      %p43 = scmp.gt.s32.totalorder %s42, 0
      %s44 = scalar_select %p43, %s42, 0
      %s45 = smul.u32 %s36, 16
      %s46 = ssub.s32 %s45, 1
      %p47 = scmp.gt.s32.totalorder %s46, 0
      %s48 = scalar_select %p47, %s46, 0
      %s49 = ssub.s32 %s28, %s40
      %s50 = ssub.s32 %s44, %s48
      %s51 = sor.u32 %s49, %s50
      %p52 = scmp.eq.s32.totalorder %s51, 0
      %s54 = sadd.s32 %s53, 1
      %s55 = scalar_select %p52, %s53, %s54
      %p58 = pneg %p52
      %p59 = scmp.eq.s32.totalorder %s21, 1
      %p60 = por %p58, %p59
      %p61 = scmp.ne.s32.totalorder %s53, %s56
      %p62 = scmp.eq.s32.totalorder %s21, 0
      %p63 = por %p61, %p62
      %p64 = scmp.ne.s32.totalorder %s53, %s56
      %p65 = scmp.eq.s32.totalorder %s26, 1
      %p66 = por %p64, %p65
      %p67 = scmp.ne.s32.totalorder %s56, %s57
      %p68 = scmp.eq.s32.totalorder %s26, 0
      %p69 = por %p67, %p68
      %p70 = scmp.ne.s32.totalorder %s56, %s57
      %p71 = scmp.eq.s32.totalorder %s27, 1
      %p72 = por %p70, %p71
      %p74 = scmp.ne.s32.totalorder %s57, %s73
      %p75 = scmp.eq.s32.totalorder %s27, 0
      %p76 = por %p74, %p75
      %s77 = ssub.s32 %s28, %s40
      %s78 = ssub.s32 %s29, %s36
      %s79 = sor.u32 %s77, %s78
      %p80 = scmp.eq.s32.totalorder %s79, 0
      %s82 = sadd.s32 %s81, 1
      %s83 = scalar_select %p80, %s81, %s82
      %p86 = pneg %p80
      %p87 = scmp.eq.s32.totalorder %s21, 1
      %p88 = por %p86, %p87
      %p89 = scmp.ne.s32.totalorder %s81, %s84
      %p90 = scmp.eq.s32.totalorder %s21, 0
      %p91 = por %p89, %p90
      %p92 = scmp.ne.s32.totalorder %s81, %s84
      %p93 = scmp.eq.s32.totalorder %s26, 1
      %p94 = por %p92, %p93
      %p95 = scmp.ne.s32.totalorder %s84, %s85
      %p96 = scmp.eq.s32.totalorder %s26, 0
      %p97 = por %p95, %p96
      %p98 = scmp.ne.s32.totalorder %s84, %s85
      %p99 = scmp.eq.s32.totalorder %s27, 1
      %p100 = por %p98, %p99
      %p102 = scmp.ne.s32.totalorder %s85, %s101
      %p103 = scmp.eq.s32.totalorder %s27, 0
      %p104 = por %p102, %p103
      %s105 = smul.u32 %s29, 16
      %s106 = sadd.s32 %s105, 16
      %p107 = scmp.lt.s32.totalorder %s106, 15
      %s108 = scalar_select %p107, %s106, 15
      %s109 = smul.u32 %s36, 16
      %s110 = sadd.s32 %s109, 16
      %p111 = scmp.lt.s32.totalorder %s110, 15
      %s112 = scalar_select %p111, %s110, 15
      %s113 = ssub.s32 %s28, %s40
      %s114 = ssub.s32 %s108, %s112
      %s115 = sor.u32 %s113, %s114
      %p116 = scmp.eq.s32.totalorder %s115, 0
      %s118 = sadd.s32 %s117, 1
      %s119 = scalar_select %p116, %s117, %s118
      %p122 = pneg %p116
      %p123 = scmp.eq.s32.totalorder %s21, 1
      %p124 = por %p122, %p123
      %p125 = scmp.ne.s32.totalorder %s117, %s120
      %p126 = scmp.eq.s32.totalorder %s21, 0
      %p127 = por %p125, %p126
      %p128 = scmp.ne.s32.totalorder %s117, %s120
      %p129 = scmp.eq.s32.totalorder %s26, 1
      %p130 = por %p128, %p129
      %p131 = scmp.ne.s32.totalorder %s120, %s121
      %p132 = scmp.eq.s32.totalorder %s26, 0
      %p133 = por %p131, %p132
      %p134 = scmp.ne.s32.totalorder %s120, %s121
      %p135 = scmp.eq.s32.totalorder %s27, 1
      %p136 = por %p134, %p135
      %p138 = scmp.ne.s32.totalorder %s121, %s137
      %p139 = scmp.eq.s32.totalorder %s27, 0
      %p140 = por %p138, %p139
      %s142 = sadd.s32 %s141, 1
      %p145 = scmp.eq.s32.totalorder %s21, 1
      %p146 = scmp.ne.s32.totalorder %s141, %s143
      %p147 = scmp.eq.s32.totalorder %s21, 0
      %p148 = por %p146, %p147
      %p149 = scmp.ne.s32.totalorder %s141, %s143
      %p150 = scmp.eq.s32.totalorder %s26, 1
      %p151 = por %p149, %p150
      %p152 = scmp.ne.s32.totalorder %s143, %s144
      %p153 = scmp.eq.s32.totalorder %s26, 0
      %p154 = por %p152, %p153
      %p155 = scmp.ne.s32.totalorder %s143, %s144
      %p156 = scmp.eq.s32.totalorder %s27, 1
      %p157 = por %p155, %p156
      %p159 = scmp.ne.s32.totalorder %s144, %s158
      %p160 = scmp.eq.s32.totalorder %s27, 0
      %p161 = por %p159, %p160
      %s163 = sadd.s32 %s162, 1
      %p166 = scmp.eq.s32.totalorder %s21, 1
      %p167 = scmp.ne.s32.totalorder %s162, %s164
      %p168 = scmp.eq.s32.totalorder %s21, 0
      %p169 = por %p167, %p168
      %p170 = scmp.ne.s32.totalorder %s162, %s164
      %p171 = scmp.eq.s32.totalorder %s26, 1
      %p172 = por %p170, %p171
      %p173 = scmp.ne.s32.totalorder %s164, %s165
      %p174 = scmp.eq.s32.totalorder %s26, 0
      %p175 = por %p173, %p174
      %p176 = scmp.ne.s32.totalorder %s164, %s165
      %p177 = scmp.eq.s32.totalorder %s27, 1
      %p178 = por %p176, %p177
      %p180 = scmp.ne.s32.totalorder %s165, %s179
      %p181 = scmp.eq.s32.totalorder %s27, 0
      %p182 = por %p180, %p181
      %s183 = ssub.s32 %s28, %s40
      %s184 = ssub.s32 %s29, %s36
      %s185 = sor.u32 %s183, %s184
      %p186 = scmp.eq.s32.totalorder %s185, 0
      %s188 = sadd.s32 %s187, 1
      %s189 = scalar_select %p186, %s187, %s188
      %p192 = pneg %p186
      %p193 = scmp.eq.s32.totalorder %s21, 1
      %p194 = por %p192, %p193
      %p195 = scmp.ne.s32.totalorder %s187, %s190
      %p196 = scmp.eq.s32.totalorder %s21, 0
      %p197 = por %p195, %p196
      %p198 = scmp.ne.s32.totalorder %s187, %s190
      %p199 = scmp.eq.s32.totalorder %s26, 1
      %p200 = por %p198, %p199
      %p201 = scmp.ne.s32.totalorder %s190, %s191
      %p202 = scmp.eq.s32.totalorder %s26, 0
      %p203 = por %p201, %p202
      %p204 = scmp.ne.s32.totalorder %s190, %s191
      %p205 = scmp.eq.s32.totalorder %s27, 1
      %p206 = por %p204, %p205
      %p208 = scmp.ne.s32.totalorder %s191, %s207
      %p209 = scmp.eq.s32.totalorder %s27, 0
      %p210 = por %p208, %p209
      %p211 = scmp.le.s32.totalorder 1, %s21
      %p212 = scmp.lt.s32.totalorder %s21, 3
      %p213 = pnand %p211, %p212
      %p214 = pneg %p213
      // Predicated region
      $region9: #{tpu_custom_call.1} parent=5 // pred_check
        _
      $region10: #{tpu_custom_call.1} parent=5 // pred_check_branch
        %216 = sbr.rel (%p213) target = $region12
      $region11: #{tpu_custom_call.1} parent=5 // pred_region
        %s217 = ssub.s32 %s21, 1
        // Predicated region
        $region13: #{tpu_custom_call.1} parent=11 // pred_check
          %p218 = pneg %p154
        $region14: #{tpu_custom_call.1} parent=11 // pred_check_branch
          %220 = sbr.rel (%p218) target = $region16
        $region15: #{tpu_custom_call.1} parent=11 // pred_region
          %s222 = ssub.s32 256, 256
          %223 = vsyncadd [#allocation9], %s222
          %s224 = sshll.u32 [#allocation8], 4
          %s225 = int_to_ptr.vmem [resolvable:$true] %s224
          %230 = dma.hbm_to_vmem [thread:$0]  %s3, 256, %s225, [#allocation9], 128, 128, 8
        $region16: #{tpu_custom_call.1} parent=11 // pred_fallthru
          _
        // Predicated region
        $region17: #{tpu_custom_call.1} parent=11 // pred_check
          %p231 = pneg %p175
        $region18: #{tpu_custom_call.1} parent=11 // pred_check_branch
          %233 = sbr.rel (%p231) target = $region20
        $region19: #{tpu_custom_call.1} parent=11 // pred_region
          _
        $region20: #{tpu_custom_call.1} parent=11 // pred_fallthru
          _
      $region12: #{tpu_custom_call.1} parent=5 // pred_fallthru
        _
      %p234 = scmp.lt.s32.totalorder %s21, 2
      // Predicated region
      $region21: #{tpu_custom_call.1} parent=5 // pred_check
        %p235 = pneg %p234
      $region22: #{tpu_custom_call.1} parent=5 // pred_check_branch
        %237 = sbr.rel (%p235) target = $region24
      $region23: #{tpu_custom_call.1} parent=5 // pred_region
        // Predicated region
        $region25: #{tpu_custom_call.1} parent=23 // pred_check
          %p238 = pneg %p63
        $region26: #{tpu_custom_call.1} parent=23 // pred_check_branch
          %240 = sbr.rel (%p238) target = $region28
        $region27: #{tpu_custom_call.1} parent=23 // pred_region
          %s241 = sand.u32 %s53, 1
          %s242 = scalar_lea.sflag [#allocation3], %s241
          %s243 = sand.u32 %s53, 1
          %s244 = smul.addr %s243, 16
          %s245 = scalar_lea.vmem [#allocation2], %s244
          %s246 = smul.u32 %s29, 16
          %s247 = ssub.s32 %s246, 1
          %p248 = scmp.gt.s32.totalorder %s247, 0
          %s249 = scalar_select %p248, %s247, 0
          %s251 = ssub.s32 256, 256
          %252 = vsyncadd %s242, %s251
          %s253 = smul.addr %s249, 2
          %s254 = smul.addr %s28, 32
          %s255 = sadd.s32 %s253, %s254
          %s256 = smul.addr %s255, 128
          %s257 = scalar_lea.hbm %s0, %s256
          %s258 = sshll.u32 %s245, 4
          %s259 = int_to_ptr.vmem [resolvable:$true] %s258
          %264 = dma.hbm_to_vmem [thread:$0]  %s257, 256, %s259, %s242, 128, 128, 8
        $region28: #{tpu_custom_call.1} parent=23 // pred_fallthru
          _
        // Predicated region
        $region29: #{tpu_custom_call.1} parent=23 // pred_check
          %p265 = pneg %p91
        $region30: #{tpu_custom_call.1} parent=23 // pred_check_branch
          %267 = sbr.rel (%p265) target = $region32
        $region31: #{tpu_custom_call.1} parent=23 // pred_region
          %s268 = sand.u32 %s21, 1
          %s269 = scalar_lea.sflag [#allocation6], %s268
          %s270 = sand.u32 %s81, 1
          %s271 = smul.addr %s270, 256
          %s272 = scalar_lea.vmem [#allocation5], %s271
          %s273 = smul.u32 16, %s29
          %s275 = ssub.s32 4096, 4096
          %276 = vsyncadd %s269, %s275
          %s277 = smul.addr %s273, 2
          %s278 = smul.addr %s28, 32
          %s279 = sadd.s32 %s277, %s278
          %s280 = smul.addr %s279, 128
          %s281 = scalar_lea.hbm %s1, %s280
          %s282 = sshll.u32 %s272, 4
          %s283 = int_to_ptr.vmem [resolvable:$true] %s282
          %288 = dma.hbm_to_vmem [thread:$0]  %s281, 4096, %s283, %s269, 128, 128, 8
        $region32: #{tpu_custom_call.1} parent=23 // pred_fallthru
          _
        // Predicated region
        $region33: #{tpu_custom_call.1} parent=23 // pred_check
          %p289 = pneg %p127
        $region34: #{tpu_custom_call.1} parent=23 // pred_check_branch
          %291 = sbr.rel (%p289) target = $region36
        $region35: #{tpu_custom_call.1} parent=23 // pred_region
          %s292 = sand.u32 %s21, 1
          %s293 = scalar_lea.sflag [#allocation6], %s292
          %s294 = sand.u32 %s117, 1
          %s295 = smul.addr %s294, 16
          %s296 = scalar_lea.vmem [#allocation7], %s295
          %s297 = smul.u32 %s29, 16
          %s298 = sadd.s32 %s297, 16
          %p299 = scmp.lt.s32.totalorder %s298, 15
          %s300 = scalar_select %p299, %s298, 15
          %s302 = ssub.s32 256, 256
          %303 = vsyncadd %s293, %s302
          %s304 = smul.addr %s300, 2
          %s305 = smul.addr %s28, 32
          %s306 = sadd.s32 %s304, %s305
          %s307 = smul.addr %s306, 128
          %s308 = scalar_lea.hbm %s2, %s307
          %s309 = sshll.u32 %s296, 4
          %s310 = int_to_ptr.vmem [resolvable:$true] %s309
          %315 = dma.hbm_to_vmem [thread:$0]  %s308, 256, %s310, %s293, 128, 128, 8
        $region36: #{tpu_custom_call.1} parent=23 // pred_fallthru
          _
      $region24: #{tpu_custom_call.1} parent=5 // pred_fallthru
        _
      %p316 = scmp.le.s32.totalorder 1, %s21
      %p317 = scmp.lt.s32.totalorder %s21, 3
      %p318 = pnand %p316, %p317
      %p319 = pneg %p318
      // Predicated region
      $region37: #{tpu_custom_call.1} parent=5 // pred_check
        _
      $region38: #{tpu_custom_call.1} parent=5 // pred_check_branch
        %321 = sbr.rel (%p318) target = $region40
      $region39: #{tpu_custom_call.1} parent=5 // pred_region
        %s322 = ssub.s32 %s21, 1
        %s323 = sand.u32 %s56, 1
        %s324 = scalar_lea.sflag [#allocation3], %s323
        %s325 = sand.u32 %s56, 1
        %s326 = smul.addr %s325, 16
        %s327 = scalar_lea.vmem [#allocation2], %s326
        // Predicated region
        $region41: #{tpu_custom_call.1} parent=39 // pred_check
          %p328 = pneg %p69
        $region42: #{tpu_custom_call.1} parent=39 // pred_check_branch
          %330 = sbr.rel (%p328) target = $region44
        $region43: #{tpu_custom_call.1} parent=39 // pred_region
          %331 = dma.done %s324, 256
        $region44: #{tpu_custom_call.1} parent=39 // pred_fallthru
          _
        %s332 = sand.u32 %s26, 1
        %s333 = scalar_lea.sflag [#allocation6], %s332
        %s334 = sand.u32 %s84, 1
        %s335 = smul.addr %s334, 256
        %s336 = scalar_lea.vmem [#allocation5], %s335
        // Predicated region
        $region45: #{tpu_custom_call.1} parent=39 // pred_check
          %p337 = pneg %p97
        $region46: #{tpu_custom_call.1} parent=39 // pred_check_branch
          %339 = sbr.rel (%p337) target = $region48
        $region47: #{tpu_custom_call.1} parent=39 // pred_region
          %340 = dma.done %s333, 4096
        $region48: #{tpu_custom_call.1} parent=39 // pred_fallthru
          _
        %s341 = sand.u32 %s26, 1
        %s342 = scalar_lea.sflag [#allocation6], %s341
        %s343 = sand.u32 %s120, 1
        %s344 = smul.addr %s343, 16
        %s345 = scalar_lea.vmem [#allocation7], %s344
        // Predicated region
        $region49: #{tpu_custom_call.1} parent=39 // pred_check
          %p346 = pneg %p133
        $region50: #{tpu_custom_call.1} parent=39 // pred_check_branch
          %348 = sbr.rel (%p346) target = $region52
        $region51: #{tpu_custom_call.1} parent=39 // pred_region
          %349 = dma.done %s342, 256
        $region52: #{tpu_custom_call.1} parent=39 // pred_fallthru
          _
        // Predicated region
        $region53: #{tpu_custom_call.1} parent=39 // pred_check
          %p350 = pneg %p154
        $region54: #{tpu_custom_call.1} parent=39 // pred_check_branch
          %352 = sbr.rel (%p350) target = $region56
        $region55: #{tpu_custom_call.1} parent=39 // pred_region
          %353 = dma.done [#allocation9], 256
        $region56: #{tpu_custom_call.1} parent=39 // pred_fallthru
          _
        %s354 = sand.u32 %s56, 1
        %s355 = scalar_lea.sflag [#allocation3], %s354
        %s356 = sand.u32 %s56, 1
        %s357 = smul.addr %s356, 16
        %s358 = scalar_lea.vmem [#allocation2], %s357
        %p359 = pneg %p69
        %p360 = pneg %p66
        %s361 = sand.u32 %s26, 1
        %s362 = scalar_lea.sflag [#allocation6], %s361
        %s363 = sand.u32 %s84, 1
        %s364 = smul.addr %s363, 256
        %s365 = scalar_lea.vmem [#allocation5], %s364
        %p366 = pneg %p97
        %p367 = pneg %p94
        %s368 = sand.u32 %s26, 1
        %s369 = scalar_lea.sflag [#allocation6], %s368
        %s370 = sand.u32 %s120, 1
        %s371 = smul.addr %s370, 16
        %s372 = scalar_lea.vmem [#allocation7], %s371
        %p373 = pneg %p133
        %p374 = pneg %p130
        %p375 = pneg %p154
        %p376 = pneg %p151
        %p377 = pneg %p175
        %p378 = pneg %p172
        %p379 = pneg %p203
        %p380 = pneg %p200
        %s381 = sand.u32 %s190, 1
        %s382 = scalar_lea.sflag [#allocation4], %s381
        %s383 = sand.u32 %s190, 1
        %s384 = smul.addr %s383, 256
        %s385 = scalar_lea.vmem [#allocation10], %s384
        %s386 = smul.u32 %s31, 16
        %s387 = ssub.s32 %s386, 1
        %p388 = scmp.gt.s32.totalorder %s387, 0
        %s389 = scalar_select %p388, %s387, 0
        %s390 = smul.u32 16, %s31
        %s391 = smul.u32 %s31, 16
        %s392 = sadd.s32 %s391, 16
        %p393 = scmp.lt.s32.totalorder %s392, 15
        %s394 = scalar_select %p393, %s392, 15
        %s395 = smul.u32 16, %s31
        %v396 = vlaneseq
        %v397 = vshrl.u32 %v396, 7
        %v398 = vadd.s32 %v397, 8
        %vm399 = vcmp.eq.s32.totalorder %v397, 0
        %vm400 = vcmp.eq.s32.totalorder %v398, 0
        %vm401 = vcmp.eq.s32.totalorder %v397, 15
        %vm402 = vcmp.eq.s32.totalorder %v398, 15
        %v403 = vld [vmem:[#allocation8] sm:$0xff]
        %v404 = vld [vmem:[#allocation8 + $0x8] sm:$0x1]
        %v405 = vsel %vm399, 1, 0
        %v406 = vsel %vm400, 1, 0
        %vm407 = vcmp.eq.s32.totalorder %v405, 1
        %vm408 = vcmp.eq.s32.totalorder %v406, 1
        %v409 = vlaneseq
        %v410 = vshrl.u32 %v409, 7
        %v411 = vsub.s32 0, %v410
        %v412 = vrot.slane %v403, %v411
        %v413 = vsel %vm407, 0.0, %v412
        %v414 = vsel %vm408, 0.0, %v412
        %v415 = vsel %vm401, 1, 0
        %v416 = vsel %vm402, 1, 0
        %vm417 = vcmp.eq.s32.totalorder %v415, 1
        %vm418 = vcmp.eq.s32.totalorder %v416, 1
        %v419 = vlaneseq
        %v420 = vshrl.u32 %v419, 7
        %v421 = vsub.s32 2, %v420
        %v422 = vrot.slane %v403, %v421
        %v423 = vsel %vm417, 0.0, %v422
        %v424 = vsel %vm418, 0.0, %v422
        %v425 = vlaneseq
        %v426 = vshrl.u32 %v425, 7
        %v427 = vsub.s32 3, %v426
        %v428 = vrot.slane %v403, %v427
        %v429 = vsel %vm407, 0.0, %v428
        %v430 = vsel %vm408, 0.0, %v428
        %v431 = vlaneseq
        %v432 = vshrl.u32 %v431, 7
        %v433 = vsub.s32 5, %v432
        %v434 = vrot.slane %v403, %v433
        %v435 = vsel %vm417, 0.0, %v434
        %v436 = vsel %vm418, 0.0, %v434
        %v437 = vlaneseq
        %v438 = vshrl.u32 %v437, 7
        %v439 = vsub.s32 6, %v438
        %v440 = vrot.slane %v403, %v439
        %v441 = vsel %vm407, 0.0, %v440
        %v442 = vsel %vm408, 0.0, %v440
        %v443 = vlaneseq
        %v444 = vshrl.u32 %v443, 7
        %v445 = vsub.s32 0, %v444
        %v446 = vrot.slane %v404, %v445
        %v447 = vsel %vm417, 0.0, %v446
        %v448 = vsel %vm418, 0.0, %v446
        %v449 = vld [vmem:[%s336] sm:$0xff]
        %v450 = vld [vmem:[%s336 + $0x8] sm:$0xff]
        %v451 = vld [vmem:[%s336 + $0x10] sm:$0xff]
        %v452 = vld [vmem:[%s336 + $0x18] sm:$0xff]
        %v453 = vld [vmem:[%s336 + $0x20] sm:$0xff]
        %v454 = vld [vmem:[%s336 + $0x28] sm:$0xff]
        %v455 = vld [vmem:[%s336 + $0x30] sm:$0xff]
        %v456 = vld [vmem:[%s336 + $0x38] sm:$0xff]
        %v457 = vld [vmem:[%s336 + $0x40] sm:$0xff]
        %v458 = vld [vmem:[%s336 + $0x48] sm:$0xff]
        %v459 = vld [vmem:[%s336 + $0x50] sm:$0xff]
        %v460 = vld [vmem:[%s336 + $0x58] sm:$0xff]
        %v461 = vld [vmem:[%s336 + $0x60] sm:$0xff]
        %v462 = vld [vmem:[%s336 + $0x68] sm:$0xff]
        %v463 = vld [vmem:[%s336 + $0x70] sm:$0xff]
        %v464 = vld [vmem:[%s336 + $0x78] sm:$0xff]
        %v465 = vld [vmem:[%s336 + $0x80] sm:$0xff]
        %v466 = vld [vmem:[%s336 + $0x88] sm:$0xff]
        %v467 = vld [vmem:[%s336 + $0x90] sm:$0xff]
        %v468 = vld [vmem:[%s336 + $0x98] sm:$0xff]
        %v469 = vld [vmem:[%s336 + $0xa0] sm:$0xff]
        %v470 = vld [vmem:[%s336 + $0xa8] sm:$0xff]
        %v471 = vld [vmem:[%s336 + $0xb0] sm:$0xff]
        %v472 = vld [vmem:[%s336 + $0xb8] sm:$0xff]
        %v473 = vld [vmem:[%s336 + $0xc0] sm:$0xff]
        %v474 = vld [vmem:[%s336 + $0xc8] sm:$0xff]
        %v475 = vld [vmem:[%s336 + $0xd0] sm:$0xff]
        %v476 = vld [vmem:[%s336 + $0xd8] sm:$0xff]
        %v477 = vld [vmem:[%s336 + $0xe0] sm:$0xff]
        %v478 = vld [vmem:[%s336 + $0xe8] sm:$0xff]
        %v479 = vld [vmem:[%s336 + $0xf0] sm:$0xff]
        %v480 = vld [vmem:[%s336 + $0xf8] sm:$0xff]
        %v481 = vrot.slane %v449, 7
        %v482 = vrot.slane %v451, 7
        %v483 = vrot.slane %v453, 7
        %v484 = vrot.slane %v455, 7
        %v485 = vrot.slane %v457, 7
        %v486 = vrot.slane %v459, 7
        %v487 = vrot.slane %v461, 7
        %v488 = vrot.slane %v463, 7
        %v489 = vrot.slane %v465, 7
        %v490 = vrot.slane %v467, 7
        %v491 = vrot.slane %v469, 7
        %v492 = vrot.slane %v471, 7
        %v493 = vrot.slane %v473, 7
        %v494 = vrot.slane %v475, 7
        %v495 = vrot.slane %v477, 7
        %v496 = vrot.slane %v479, 7
        %v497 = vrot.slane %v450, 7
        %v498 = vrot.slane %v452, 7
        %v499 = vrot.slane %v454, 7
        %v500 = vrot.slane %v456, 7
        %v501 = vrot.slane %v458, 7
        %v502 = vrot.slane %v460, 7
        %v503 = vrot.slane %v462, 7
        %v504 = vrot.slane %v464, 7
        %v505 = vrot.slane %v466, 7
        %v506 = vrot.slane %v468, 7
        %v507 = vrot.slane %v470, 7
        %v508 = vrot.slane %v472, 7
        %v509 = vrot.slane %v474, 7
        %v510 = vrot.slane %v476, 7
        %v511 = vrot.slane %v478, 7
        %v512 = vrot.slane %v480, 7
        %vm513 = vcmp.lt.s32.totalorder %v397, 1
        %v514 = vsel %vm513, %v481, %v497
        %v515 = vsel %vm513, %v482, %v498
        %v516 = vsel %vm513, %v483, %v499
        %v517 = vsel %vm513, %v484, %v500
        %v518 = vsel %vm513, %v485, %v501
        %v519 = vsel %vm513, %v486, %v502
        %v520 = vsel %vm513, %v487, %v503
        %v521 = vsel %vm513, %v488, %v504
        %v522 = vsel %vm513, %v489, %v505
        %v523 = vsel %vm513, %v490, %v506
        %v524 = vsel %vm513, %v491, %v507
        %v525 = vsel %vm513, %v492, %v508
        %v526 = vsel %vm513, %v493, %v509
        %v527 = vsel %vm513, %v494, %v510
        %v528 = vsel %vm513, %v495, %v511
        %v529 = vsel %vm513, %v496, %v512
        %v530 = vsel %vm513, %v497, %v481
        %v531 = vsel %vm513, %v498, %v482
        %v532 = vsel %vm513, %v499, %v483
        %v533 = vsel %vm513, %v500, %v484
        %v534 = vsel %vm513, %v501, %v485
        %v535 = vsel %vm513, %v502, %v486
        %v536 = vsel %vm513, %v503, %v487
        %v537 = vsel %vm513, %v504, %v488
        %v538 = vsel %vm513, %v505, %v489
        %v539 = vsel %vm513, %v506, %v490
        %v540 = vsel %vm513, %v507, %v491
        %v541 = vsel %vm513, %v508, %v492
        %v542 = vsel %vm513, %v509, %v493
        %v543 = vsel %vm513, %v510, %v494
        %v544 = vsel %vm513, %v511, %v495
        %v545 = vsel %vm513, %v512, %v496
        %v546 = vrot.slane %v449, 1
        %v547 = vrot.slane %v451, 1
        %v548 = vrot.slane %v453, 1
        %v549 = vrot.slane %v455, 1
        %v550 = vrot.slane %v457, 1
        %v551 = vrot.slane %v459, 1
        %v552 = vrot.slane %v461, 1
        %v553 = vrot.slane %v463, 1
        %v554 = vrot.slane %v465, 1
        %v555 = vrot.slane %v467, 1
        %v556 = vrot.slane %v469, 1
        %v557 = vrot.slane %v471, 1
        %v558 = vrot.slane %v473, 1
        %v559 = vrot.slane %v475, 1
        %v560 = vrot.slane %v477, 1
        %v561 = vrot.slane %v479, 1
        %v562 = vrot.slane %v450, 1
        %v563 = vrot.slane %v452, 1
        %v564 = vrot.slane %v454, 1
        %v565 = vrot.slane %v456, 1
        %v566 = vrot.slane %v458, 1
        %v567 = vrot.slane %v460, 1
        %v568 = vrot.slane %v462, 1
        %v569 = vrot.slane %v464, 1
        %v570 = vrot.slane %v466, 1
        %v571 = vrot.slane %v468, 1
        %v572 = vrot.slane %v470, 1
        %v573 = vrot.slane %v472, 1
        %v574 = vrot.slane %v474, 1
        %v575 = vrot.slane %v476, 1
        %v576 = vrot.slane %v478, 1
        %v577 = vrot.slane %v480, 1
        %vm578 = vcmp.lt.s32.totalorder %v397, 7
        %v579 = vsel %vm578, %v546, %v562
        %v580 = vsel %vm578, %v547, %v563
        %v581 = vsel %vm578, %v548, %v564
        %v582 = vsel %vm578, %v549, %v565
        %v583 = vsel %vm578, %v550, %v566
        %v584 = vsel %vm578, %v551, %v567
        %v585 = vsel %vm578, %v552, %v568
        %v586 = vsel %vm578, %v553, %v569
        %v587 = vsel %vm578, %v554, %v570
        %v588 = vsel %vm578, %v555, %v571
        %v589 = vsel %vm578, %v556, %v572
        %v590 = vsel %vm578, %v557, %v573
        %v591 = vsel %vm578, %v558, %v574
        %v592 = vsel %vm578, %v559, %v575
        %v593 = vsel %vm578, %v560, %v576
        %v594 = vsel %vm578, %v561, %v577
        %v595 = vsel %vm578, %v562, %v546
        %v596 = vsel %vm578, %v563, %v547
        %v597 = vsel %vm578, %v564, %v548
        %v598 = vsel %vm578, %v565, %v549
        %v599 = vsel %vm578, %v566, %v550
        %v600 = vsel %vm578, %v567, %v551
        %v601 = vsel %vm578, %v568, %v552
        %v602 = vsel %vm578, %v569, %v553
        %v603 = vsel %vm578, %v570, %v554
        %v604 = vsel %vm578, %v571, %v555
        %v605 = vsel %vm578, %v572, %v556
        %v606 = vsel %vm578, %v573, %v557
        %v607 = vsel %vm578, %v574, %v558
        %v608 = vsel %vm578, %v575, %v559
        %v609 = vsel %vm578, %v576, %v560
        %v610 = vsel %vm578, %v577, %v561
        %v611 = vld [vmem:[%s4] sm:$0x1]
        %v612 = vlaneseq
        %v613 = vshrl.u32 %v612, 7
        %v614 = vsub.s32 4, %v613
        %v615 = vrot.slane %v403, %v614
        %v616 = vmul.f32 %v449, %v615
        %v617 = vmul.f32 %v450, %v615
        %v618 = vmul.f32 %v451, %v615
        %v619 = vmul.f32 %v452, %v615
        %v620 = vmul.f32 %v453, %v615
        %v621 = vmul.f32 %v454, %v615
        %v622 = vmul.f32 %v455, %v615
        %v623 = vmul.f32 %v456, %v615
        %v624 = vmul.f32 %v457, %v615
        %v625 = vmul.f32 %v458, %v615
        %v626 = vmul.f32 %v459, %v615
        %v627 = vmul.f32 %v460, %v615
        %v628 = vmul.f32 %v461, %v615
        %v629 = vmul.f32 %v462, %v615
        %v630 = vmul.f32 %v463, %v615
        %v631 = vmul.f32 %v464, %v615
        %v632 = vmul.f32 %v465, %v615
        %v633 = vmul.f32 %v466, %v615
        %v634 = vmul.f32 %v467, %v615
        %v635 = vmul.f32 %v468, %v615
        %v636 = vmul.f32 %v469, %v615
        %v637 = vmul.f32 %v470, %v615
        %v638 = vmul.f32 %v471, %v615
        %v639 = vmul.f32 %v472, %v615
        %v640 = vmul.f32 %v473, %v615
        %v641 = vmul.f32 %v474, %v615
        %v642 = vmul.f32 %v475, %v615
        %v643 = vmul.f32 %v476, %v615
        %v644 = vmul.f32 %v477, %v615
        %v645 = vmul.f32 %v478, %v615
        %v646 = vmul.f32 %v479, %v615
        %v647 = vmul.f32 %v480, %v615
        %v648 = vmul.f32 %v530, %v429
        %v649 = vmul.f32 %v514, %v430
        %v650 = vmul.f32 %v531, %v429
        %v651 = vmul.f32 %v515, %v430
        %v652 = vmul.f32 %v532, %v429
        %v653 = vmul.f32 %v516, %v430
        %v654 = vmul.f32 %v533, %v429
        %v655 = vmul.f32 %v517, %v430
        %v656 = vmul.f32 %v534, %v429
        %v657 = vmul.f32 %v518, %v430
        %v658 = vmul.f32 %v535, %v429
        %v659 = vmul.f32 %v519, %v430
        %v660 = vmul.f32 %v536, %v429
        %v661 = vmul.f32 %v520, %v430
        %v662 = vmul.f32 %v537, %v429
        %v663 = vmul.f32 %v521, %v430
        %v664 = vmul.f32 %v538, %v429
        %v665 = vmul.f32 %v522, %v430
        %v666 = vmul.f32 %v539, %v429
        %v667 = vmul.f32 %v523, %v430
        %v668 = vmul.f32 %v540, %v429
        %v669 = vmul.f32 %v524, %v430
        %v670 = vmul.f32 %v541, %v429
        %v671 = vmul.f32 %v525, %v430
        %v672 = vmul.f32 %v542, %v429
        %v673 = vmul.f32 %v526, %v430
        %v674 = vmul.f32 %v543, %v429
        %v675 = vmul.f32 %v527, %v430
        %v676 = vmul.f32 %v544, %v429
        %v677 = vmul.f32 %v528, %v430
        %v678 = vmul.f32 %v545, %v429
        %v679 = vmul.f32 %v529, %v430
        %v680 = vadd.f32 %v616, %v648
        %v681 = vadd.f32 %v617, %v649
        %v682 = vadd.f32 %v618, %v650
        %v683 = vadd.f32 %v619, %v651
        %v684 = vadd.f32 %v620, %v652
        %v685 = vadd.f32 %v621, %v653
        %v686 = vadd.f32 %v622, %v654
        %v687 = vadd.f32 %v623, %v655
        %v688 = vadd.f32 %v624, %v656
        %v689 = vadd.f32 %v625, %v657
        %v690 = vadd.f32 %v626, %v658
        %v691 = vadd.f32 %v627, %v659
        %v692 = vadd.f32 %v628, %v660
        %v693 = vadd.f32 %v629, %v661
        %v694 = vadd.f32 %v630, %v662
        %v695 = vadd.f32 %v631, %v663
        %v696 = vadd.f32 %v632, %v664
        %v697 = vadd.f32 %v633, %v665
        %v698 = vadd.f32 %v634, %v666
        %v699 = vadd.f32 %v635, %v667
        %v700 = vadd.f32 %v636, %v668
        %v701 = vadd.f32 %v637, %v669
        %v702 = vadd.f32 %v638, %v670
        %v703 = vadd.f32 %v639, %v671
        %v704 = vadd.f32 %v640, %v672
        %v705 = vadd.f32 %v641, %v673
        %v706 = vadd.f32 %v642, %v674
        %v707 = vadd.f32 %v643, %v675
        %v708 = vadd.f32 %v644, %v676
        %v709 = vadd.f32 %v645, %v677
        %v710 = vadd.f32 %v646, %v678
        %v711 = vadd.f32 %v647, %v679
        %v712 = vmul.f32 %v579, %v435
        %v713 = vmul.f32 %v595, %v436
        %v714 = vmul.f32 %v580, %v435
        %v715 = vmul.f32 %v596, %v436
        %v716 = vmul.f32 %v581, %v435
        %v717 = vmul.f32 %v597, %v436
        %v718 = vmul.f32 %v582, %v435
        %v719 = vmul.f32 %v598, %v436
        %v720 = vmul.f32 %v583, %v435
        %v721 = vmul.f32 %v599, %v436
        %v722 = vmul.f32 %v584, %v435
        %v723 = vmul.f32 %v600, %v436
        %v724 = vmul.f32 %v585, %v435
        %v725 = vmul.f32 %v601, %v436
        %v726 = vmul.f32 %v586, %v435
        %v727 = vmul.f32 %v602, %v436
        %v728 = vmul.f32 %v587, %v435
        %v729 = vmul.f32 %v603, %v436
        %v730 = vmul.f32 %v588, %v435
        %v731 = vmul.f32 %v604, %v436
        %v732 = vmul.f32 %v589, %v435
        %v733 = vmul.f32 %v605, %v436
        %v734 = vmul.f32 %v590, %v435
        %v735 = vmul.f32 %v606, %v436
        %v736 = vmul.f32 %v591, %v435
        %v737 = vmul.f32 %v607, %v436
        %v738 = vmul.f32 %v592, %v435
        %v739 = vmul.f32 %v608, %v436
        %v740 = vmul.f32 %v593, %v435
        %v741 = vmul.f32 %v609, %v436
        %v742 = vmul.f32 %v594, %v435
        %v743 = vmul.f32 %v610, %v436
        %v744 = vadd.f32 %v680, %v712
        %v745 = vadd.f32 %v681, %v713
        %v746 = vadd.f32 %v682, %v714
        %v747 = vadd.f32 %v683, %v715
        %v748 = vadd.f32 %v684, %v716
        %v749 = vadd.f32 %v685, %v717
        %v750 = vadd.f32 %v686, %v718
        %v751 = vadd.f32 %v687, %v719
        %v752 = vadd.f32 %v688, %v720
        %v753 = vadd.f32 %v689, %v721
        %v754 = vadd.f32 %v690, %v722
        %v755 = vadd.f32 %v691, %v723
        %v756 = vadd.f32 %v692, %v724
        %v757 = vadd.f32 %v693, %v725
        %v758 = vadd.f32 %v694, %v726
        %v759 = vadd.f32 %v695, %v727
        %v760 = vadd.f32 %v696, %v728
        %v761 = vadd.f32 %v697, %v729
        %v762 = vadd.f32 %v698, %v730
        %v763 = vadd.f32 %v699, %v731
        %v764 = vadd.f32 %v700, %v732
        %v765 = vadd.f32 %v701, %v733
        %v766 = vadd.f32 %v702, %v734
        %v767 = vadd.f32 %v703, %v735
        %v768 = vadd.f32 %v704, %v736
        %v769 = vadd.f32 %v705, %v737
        %v770 = vadd.f32 %v706, %v738
        %v771 = vadd.f32 %v707, %v739
        %v772 = vadd.f32 %v708, %v740
        %v773 = vadd.f32 %v709, %v741
        %v774 = vadd.f32 %v710, %v742
        %v775 = vadd.f32 %v711, %v743
        %v777 = vlaneseq
        %v778 = vshrl.u32 %v777, 7
        %v779 = vsub.s32 0, %v778
        %v780 = vrot.slane %v611, %v779
        %v782 = vadd.f32 %v744, %v780
        %v783 = vadd.f32 %v745, %v780
        %v784 = vadd.f32 %v746, %v780
        %v785 = vadd.f32 %v747, %v780
        %v786 = vadd.f32 %v748, %v780
        %v787 = vadd.f32 %v749, %v780
        %v788 = vadd.f32 %v750, %v780
        %v789 = vadd.f32 %v751, %v780
        %v790 = vadd.f32 %v752, %v780
        %v791 = vadd.f32 %v753, %v780
        %v792 = vadd.f32 %v754, %v780
        %v793 = vadd.f32 %v755, %v780
        %v794 = vadd.f32 %v756, %v780
        %v795 = vadd.f32 %v757, %v780
        %v796 = vadd.f32 %v758, %v780
        %v797 = vadd.f32 %v759, %v780
        %v798 = vadd.f32 %v760, %v780
        %v799 = vadd.f32 %v761, %v780
        %v800 = vadd.f32 %v762, %v780
        %v801 = vadd.f32 %v763, %v780
        %v802 = vadd.f32 %v764, %v780
        %v803 = vadd.f32 %v765, %v780
        %v804 = vadd.f32 %v766, %v780
        %v805 = vadd.f32 %v767, %v780
        %v806 = vadd.f32 %v768, %v780
        %v807 = vadd.f32 %v769, %v780
        %v808 = vadd.f32 %v770, %v780
        %v809 = vadd.f32 %v771, %v780
        %v810 = vadd.f32 %v772, %v780
        %v811 = vadd.f32 %v773, %v780
        %v812 = vadd.f32 %v774, %v780
        %v813 = vadd.f32 %v775, %v780
        %vm814 = vcmask 261120
        %815 = vst.msk [vmem:[%s385] sm:$0xff] %vm814, %v782
        %816 = vst.msk [vmem:[%s385 + $0x8] sm:$0xff] %vm814, %v783
        %817 = vst.msk [vmem:[%s385 + $0x10] sm:$0xff] %vm814, %v784
        %818 = vst.msk [vmem:[%s385 + $0x18] sm:$0xff] %vm814, %v785
        %819 = vst.msk [vmem:[%s385 + $0x20] sm:$0xff] %vm814, %v786
        %820 = vst.msk [vmem:[%s385 + $0x28] sm:$0xff] %vm814, %v787
        %821 = vst.msk [vmem:[%s385 + $0x30] sm:$0xff] %vm814, %v788
        %822 = vst.msk [vmem:[%s385 + $0x38] sm:$0xff] %vm814, %v789
        %823 = vst.msk [vmem:[%s385 + $0x40] sm:$0xff] %vm814, %v790
        %824 = vst.msk [vmem:[%s385 + $0x48] sm:$0xff] %vm814, %v791
        %825 = vst.msk [vmem:[%s385 + $0x50] sm:$0xff] %vm814, %v792
        %826 = vst.msk [vmem:[%s385 + $0x58] sm:$0xff] %vm814, %v793
        %827 = vst.msk [vmem:[%s385 + $0x60] sm:$0xff] %vm814, %v794
        %828 = vst.msk [vmem:[%s385 + $0x68] sm:$0xff] %vm814, %v795
        %829 = vst.msk [vmem:[%s385 + $0x70] sm:$0xff] %vm814, %v796
        %830 = vst.msk [vmem:[%s385 + $0x78] sm:$0xff] %vm814, %v797
        %831 = vst.msk [vmem:[%s385 + $0x80] sm:$0xff] %vm814, %v798
        %832 = vst.msk [vmem:[%s385 + $0x88] sm:$0xff] %vm814, %v799
        %833 = vst.msk [vmem:[%s385 + $0x90] sm:$0xff] %vm814, %v800
        %834 = vst.msk [vmem:[%s385 + $0x98] sm:$0xff] %vm814, %v801
        %835 = vst.msk [vmem:[%s385 + $0xa0] sm:$0xff] %vm814, %v802
        %836 = vst.msk [vmem:[%s385 + $0xa8] sm:$0xff] %vm814, %v803
        %837 = vst.msk [vmem:[%s385 + $0xb0] sm:$0xff] %vm814, %v804
        %838 = vst.msk [vmem:[%s385 + $0xb8] sm:$0xff] %vm814, %v805
        %839 = vst.msk [vmem:[%s385 + $0xc0] sm:$0xff] %vm814, %v806
        %840 = vst.msk [vmem:[%s385 + $0xc8] sm:$0xff] %vm814, %v807
        %841 = vst.msk [vmem:[%s385 + $0xd0] sm:$0xff] %vm814, %v808
        %842 = vst.msk [vmem:[%s385 + $0xd8] sm:$0xff] %vm814, %v809
        %843 = vst.msk [vmem:[%s385 + $0xe0] sm:$0xff] %vm814, %v810
        %844 = vst.msk [vmem:[%s385 + $0xe8] sm:$0xff] %vm814, %v811
        %845 = vst.msk [vmem:[%s385 + $0xf0] sm:$0xff] %vm814, %v812
        %846 = vst.msk [vmem:[%s385 + $0xf8] sm:$0xff] %vm814, %v813
        %v847 = vlaneseq
        %v848 = vshrl.u32 %v847, 7
        %v849 = vsub.s32 1, %v848
        %v850 = vrot.slane %v403, %v849
        %v851 = vmul.f32 %v449, %v850
        %v852 = vmul.f32 %v450, %v850
        %v853 = vmul.f32 %v451, %v850
        %v854 = vmul.f32 %v452, %v850
        %v855 = vmul.f32 %v453, %v850
        %v856 = vmul.f32 %v454, %v850
        %v857 = vmul.f32 %v455, %v850
        %v858 = vmul.f32 %v456, %v850
        %v859 = vmul.f32 %v457, %v850
        %v860 = vmul.f32 %v458, %v850
        %v861 = vmul.f32 %v459, %v850
        %v862 = vmul.f32 %v460, %v850
        %v863 = vmul.f32 %v461, %v850
        %v864 = vmul.f32 %v462, %v850
        %v865 = vmul.f32 %v463, %v850
        %v866 = vmul.f32 %v464, %v850
        %v867 = vmul.f32 %v465, %v850
        %v868 = vmul.f32 %v466, %v850
        %v869 = vmul.f32 %v467, %v850
        %v870 = vmul.f32 %v468, %v850
        %v871 = vmul.f32 %v469, %v850
        %v872 = vmul.f32 %v470, %v850
        %v873 = vmul.f32 %v471, %v850
        %v874 = vmul.f32 %v472, %v850
        %v875 = vmul.f32 %v473, %v850
        %v876 = vmul.f32 %v474, %v850
        %v877 = vmul.f32 %v475, %v850
        %v878 = vmul.f32 %v476, %v850
        %v879 = vmul.f32 %v477, %v850
        %v880 = vmul.f32 %v478, %v850
        %v881 = vmul.f32 %v530, %v413
        %v882 = vmul.f32 %v514, %v414
        %v883 = vmul.f32 %v531, %v413
        %v884 = vmul.f32 %v515, %v414
        %v885 = vmul.f32 %v532, %v413
        %v886 = vmul.f32 %v516, %v414
        %v887 = vmul.f32 %v533, %v413
        %v888 = vmul.f32 %v517, %v414
        %v889 = vmul.f32 %v534, %v413
        %v890 = vmul.f32 %v518, %v414
        %v891 = vmul.f32 %v535, %v413
        %v892 = vmul.f32 %v519, %v414
        %v893 = vmul.f32 %v536, %v413
        %v894 = vmul.f32 %v520, %v414
        %v895 = vmul.f32 %v537, %v413
        %v896 = vmul.f32 %v521, %v414
        %v897 = vmul.f32 %v538, %v413
        %v898 = vmul.f32 %v522, %v414
        %v899 = vmul.f32 %v539, %v413
        %v900 = vmul.f32 %v523, %v414
        %v901 = vmul.f32 %v540, %v413
        %v902 = vmul.f32 %v524, %v414
        %v903 = vmul.f32 %v541, %v413
        %v904 = vmul.f32 %v525, %v414
        %v905 = vmul.f32 %v542, %v413
        %v906 = vmul.f32 %v526, %v414
        %v907 = vmul.f32 %v543, %v413
        %v908 = vmul.f32 %v527, %v414
        %v909 = vmul.f32 %v544, %v413
        %v910 = vmul.f32 %v528, %v414
        %v911 = vadd.f32 %v851, %v881
        %v912 = vadd.f32 %v852, %v882
        %v913 = vadd.f32 %v853, %v883
        %v914 = vadd.f32 %v854, %v884
        %v915 = vadd.f32 %v855, %v885
        %v916 = vadd.f32 %v856, %v886
        %v917 = vadd.f32 %v857, %v887
        %v918 = vadd.f32 %v858, %v888
        %v919 = vadd.f32 %v859, %v889
        %v920 = vadd.f32 %v860, %v890
        %v921 = vadd.f32 %v861, %v891
        %v922 = vadd.f32 %v862, %v892
        %v923 = vadd.f32 %v863, %v893
        %v924 = vadd.f32 %v864, %v894
        %v925 = vadd.f32 %v865, %v895
        %v926 = vadd.f32 %v866, %v896
        %v927 = vadd.f32 %v867, %v897
        %v928 = vadd.f32 %v868, %v898
        %v929 = vadd.f32 %v869, %v899
        %v930 = vadd.f32 %v870, %v900
        %v931 = vadd.f32 %v871, %v901
        %v932 = vadd.f32 %v872, %v902
        %v933 = vadd.f32 %v873, %v903
        %v934 = vadd.f32 %v874, %v904
        %v935 = vadd.f32 %v875, %v905
        %v936 = vadd.f32 %v876, %v906
        %v937 = vadd.f32 %v877, %v907
        %v938 = vadd.f32 %v878, %v908
        %v939 = vadd.f32 %v879, %v909
        %v940 = vadd.f32 %v880, %v910
        %v941 = vmul.f32 %v579, %v423
        %v942 = vmul.f32 %v595, %v424
        %v943 = vmul.f32 %v580, %v423
        %v944 = vmul.f32 %v596, %v424
        %v945 = vmul.f32 %v581, %v423
        %v946 = vmul.f32 %v597, %v424
        %v947 = vmul.f32 %v582, %v423
        %v948 = vmul.f32 %v598, %v424
        %v949 = vmul.f32 %v583, %v423
        %v950 = vmul.f32 %v599, %v424
        %v951 = vmul.f32 %v584, %v423
        %v952 = vmul.f32 %v600, %v424
        %v953 = vmul.f32 %v585, %v423
        %v954 = vmul.f32 %v601, %v424
        %v955 = vmul.f32 %v586, %v423
        %v956 = vmul.f32 %v602, %v424
        %v957 = vmul.f32 %v587, %v423
        %v958 = vmul.f32 %v603, %v424
        %v959 = vmul.f32 %v588, %v423
        %v960 = vmul.f32 %v604, %v424
        %v961 = vmul.f32 %v589, %v423
        %v962 = vmul.f32 %v605, %v424
        %v963 = vmul.f32 %v590, %v423
        %v964 = vmul.f32 %v606, %v424
        %v965 = vmul.f32 %v591, %v423
        %v966 = vmul.f32 %v607, %v424
        %v967 = vmul.f32 %v592, %v423
        %v968 = vmul.f32 %v608, %v424
        %v969 = vmul.f32 %v593, %v423
        %v970 = vmul.f32 %v609, %v424
        %v971 = vadd.f32 %v911, %v941
        %v972 = vadd.f32 %v912, %v942
        %v973 = vadd.f32 %v913, %v943
        %v974 = vadd.f32 %v914, %v944
        %v975 = vadd.f32 %v915, %v945
        %v976 = vadd.f32 %v916, %v946
        %v977 = vadd.f32 %v917, %v947
        %v978 = vadd.f32 %v918, %v948
        %v979 = vadd.f32 %v919, %v949
        %v980 = vadd.f32 %v920, %v950
        %v981 = vadd.f32 %v921, %v951
        %v982 = vadd.f32 %v922, %v952
        %v983 = vadd.f32 %v923, %v953
        %v984 = vadd.f32 %v924, %v954
        %v985 = vadd.f32 %v925, %v955
        %v986 = vadd.f32 %v926, %v956
        %v987 = vadd.f32 %v927, %v957
        %v988 = vadd.f32 %v928, %v958
        %v989 = vadd.f32 %v929, %v959
        %v990 = vadd.f32 %v930, %v960
        %v991 = vadd.f32 %v931, %v961
        %v992 = vadd.f32 %v932, %v962
        %v993 = vadd.f32 %v933, %v963
        %v994 = vadd.f32 %v934, %v964
        %v995 = vadd.f32 %v935, %v965
        %v996 = vadd.f32 %v936, %v966
        %v997 = vadd.f32 %v937, %v967
        %v998 = vadd.f32 %v938, %v968
        %v999 = vadd.f32 %v939, %v969
        %v1000 = vadd.f32 %v940, %v970
        %s1001 = scalar_lea.vmem %s385, 16 [#allocation10]
        %v1002 = vld [vmem:[%s1001] sm:$0xff]
        %v1003 = vld [vmem:[%s1001 + $0x8] sm:$0xff]
        %v1004 = vld [vmem:[%s1001 + $0x10] sm:$0xff]
        %v1005 = vld [vmem:[%s1001 + $0x18] sm:$0xff]
        %v1006 = vld [vmem:[%s1001 + $0x20] sm:$0xff]
        %v1007 = vld [vmem:[%s1001 + $0x28] sm:$0xff]
        %v1008 = vld [vmem:[%s1001 + $0x30] sm:$0xff]
        %v1009 = vld [vmem:[%s1001 + $0x38] sm:$0xff]
        %v1010 = vld [vmem:[%s1001 + $0x40] sm:$0xff]
        %v1011 = vld [vmem:[%s1001 + $0x48] sm:$0xff]
        %v1012 = vld [vmem:[%s1001 + $0x50] sm:$0xff]
        %v1013 = vld [vmem:[%s1001 + $0x58] sm:$0xff]
        %v1014 = vld [vmem:[%s1001 + $0x60] sm:$0xff]
        %v1015 = vld [vmem:[%s1001 + $0x68] sm:$0xff]
        %v1016 = vld [vmem:[%s1001 + $0x70] sm:$0xff]
        %v1017 = vld [vmem:[%s1001 + $0x78] sm:$0xff]
        %v1018 = vld [vmem:[%s1001 + $0x80] sm:$0xff]
        %v1019 = vld [vmem:[%s1001 + $0x88] sm:$0xff]
        %v1020 = vld [vmem:[%s1001 + $0x90] sm:$0xff]
        %v1021 = vld [vmem:[%s1001 + $0x98] sm:$0xff]
        %v1022 = vld [vmem:[%s1001 + $0xa0] sm:$0xff]
        %v1023 = vld [vmem:[%s1001 + $0xa8] sm:$0xff]
        %v1024 = vld [vmem:[%s1001 + $0xb0] sm:$0xff]
        %v1025 = vld [vmem:[%s1001 + $0xb8] sm:$0xff]
        %v1026 = vld [vmem:[%s1001 + $0xc0] sm:$0xff]
        %v1027 = vld [vmem:[%s1001 + $0xc8] sm:$0xff]
        %v1028 = vld [vmem:[%s1001 + $0xd0] sm:$0xff]
        %v1029 = vld [vmem:[%s1001 + $0xd8] sm:$0xff]
        %v1030 = vld [vmem:[%s1001 + $0xe0] sm:$0xff]
        %v1031 = vld [vmem:[%s1001 + $0xe8] sm:$0xff]
        %v1032 = vadd.f32 %v1002, %v971
        %v1033 = vadd.f32 %v1003, %v972
        %v1034 = vadd.f32 %v1004, %v973
        %v1035 = vadd.f32 %v1005, %v974
        %v1036 = vadd.f32 %v1006, %v975
        %v1037 = vadd.f32 %v1007, %v976
        %v1038 = vadd.f32 %v1008, %v977
        %v1039 = vadd.f32 %v1009, %v978
        %v1040 = vadd.f32 %v1010, %v979
        %v1041 = vadd.f32 %v1011, %v980
        %v1042 = vadd.f32 %v1012, %v981
        %v1043 = vadd.f32 %v1013, %v982
        %v1044 = vadd.f32 %v1014, %v983
        %v1045 = vadd.f32 %v1015, %v984
        %v1046 = vadd.f32 %v1016, %v985
        %v1047 = vadd.f32 %v1017, %v986
        %v1048 = vadd.f32 %v1018, %v987
        %v1049 = vadd.f32 %v1019, %v988
        %v1050 = vadd.f32 %v1020, %v989
        %v1051 = vadd.f32 %v1021, %v990
        %v1052 = vadd.f32 %v1022, %v991
        %v1053 = vadd.f32 %v1023, %v992
        %v1054 = vadd.f32 %v1024, %v993
        %v1055 = vadd.f32 %v1025, %v994
        %v1056 = vadd.f32 %v1026, %v995
        %v1057 = vadd.f32 %v1027, %v996
        %v1058 = vadd.f32 %v1028, %v997
        %v1059 = vadd.f32 %v1029, %v998
        %v1060 = vadd.f32 %v1030, %v999
        %v1061 = vadd.f32 %v1031, %v1000
        %1062 = vst.msk [vmem:[%s1001] sm:$0xff] %vm814, %v1032
        %1063 = vst.msk [vmem:[%s1001 + $0x8] sm:$0xff] %vm814, %v1033
        %1064 = vst.msk [vmem:[%s1001 + $0x10] sm:$0xff] %vm814, %v1034
        %1065 = vst.msk [vmem:[%s1001 + $0x18] sm:$0xff] %vm814, %v1035
        %1066 = vst.msk [vmem:[%s1001 + $0x20] sm:$0xff] %vm814, %v1036
        %1067 = vst.msk [vmem:[%s1001 + $0x28] sm:$0xff] %vm814, %v1037
        %1068 = vst.msk [vmem:[%s1001 + $0x30] sm:$0xff] %vm814, %v1038
        %1069 = vst.msk [vmem:[%s1001 + $0x38] sm:$0xff] %vm814, %v1039
        %1070 = vst.msk [vmem:[%s1001 + $0x40] sm:$0xff] %vm814, %v1040
        %1071 = vst.msk [vmem:[%s1001 + $0x48] sm:$0xff] %vm814, %v1041
        %1072 = vst.msk [vmem:[%s1001 + $0x50] sm:$0xff] %vm814, %v1042
        %1073 = vst.msk [vmem:[%s1001 + $0x58] sm:$0xff] %vm814, %v1043
        %1074 = vst.msk [vmem:[%s1001 + $0x60] sm:$0xff] %vm814, %v1044
        %1075 = vst.msk [vmem:[%s1001 + $0x68] sm:$0xff] %vm814, %v1045
        %1076 = vst.msk [vmem:[%s1001 + $0x70] sm:$0xff] %vm814, %v1046
        %1077 = vst.msk [vmem:[%s1001 + $0x78] sm:$0xff] %vm814, %v1047
        %1078 = vst.msk [vmem:[%s1001 + $0x80] sm:$0xff] %vm814, %v1048
        %1079 = vst.msk [vmem:[%s1001 + $0x88] sm:$0xff] %vm814, %v1049
        %1080 = vst.msk [vmem:[%s1001 + $0x90] sm:$0xff] %vm814, %v1050
        %1081 = vst.msk [vmem:[%s1001 + $0x98] sm:$0xff] %vm814, %v1051
        %1082 = vst.msk [vmem:[%s1001 + $0xa0] sm:$0xff] %vm814, %v1052
        %1083 = vst.msk [vmem:[%s1001 + $0xa8] sm:$0xff] %vm814, %v1053
        %1084 = vst.msk [vmem:[%s1001 + $0xb0] sm:$0xff] %vm814, %v1054
        %1085 = vst.msk [vmem:[%s1001 + $0xb8] sm:$0xff] %vm814, %v1055
        %1086 = vst.msk [vmem:[%s1001 + $0xc0] sm:$0xff] %vm814, %v1056
        %1087 = vst.msk [vmem:[%s1001 + $0xc8] sm:$0xff] %vm814, %v1057
        %1088 = vst.msk [vmem:[%s1001 + $0xd0] sm:$0xff] %vm814, %v1058
        %1089 = vst.msk [vmem:[%s1001 + $0xd8] sm:$0xff] %vm814, %v1059
        %1090 = vst.msk [vmem:[%s1001 + $0xe0] sm:$0xff] %vm814, %v1060
        %1091 = vst.msk [vmem:[%s1001 + $0xe8] sm:$0xff] %vm814, %v1061
        %v1092 = vlaneseq
        %v1093 = vshrl.u32 %v1092, 7
        %v1094 = vsub.s32 7, %v1093
        %v1095 = vrot.slane %v403, %v1094
        %v1096 = vmul.f32 %v451, %v1095
        %v1097 = vmul.f32 %v452, %v1095
        %v1098 = vmul.f32 %v453, %v1095
        %v1099 = vmul.f32 %v454, %v1095
        %v1100 = vmul.f32 %v455, %v1095
        %v1101 = vmul.f32 %v456, %v1095
        %v1102 = vmul.f32 %v457, %v1095
        %v1103 = vmul.f32 %v458, %v1095
        %v1104 = vmul.f32 %v459, %v1095
        %v1105 = vmul.f32 %v460, %v1095
        %v1106 = vmul.f32 %v461, %v1095
        %v1107 = vmul.f32 %v462, %v1095
        %v1108 = vmul.f32 %v463, %v1095
        %v1109 = vmul.f32 %v464, %v1095
        %v1110 = vmul.f32 %v465, %v1095
        %v1111 = vmul.f32 %v466, %v1095
        %v1112 = vmul.f32 %v467, %v1095
        %v1113 = vmul.f32 %v468, %v1095
        %v1114 = vmul.f32 %v469, %v1095
        %v1115 = vmul.f32 %v470, %v1095
        %v1116 = vmul.f32 %v471, %v1095
        %v1117 = vmul.f32 %v472, %v1095
        %v1118 = vmul.f32 %v473, %v1095
        %v1119 = vmul.f32 %v474, %v1095
        %v1120 = vmul.f32 %v475, %v1095
        %v1121 = vmul.f32 %v476, %v1095
        %v1122 = vmul.f32 %v477, %v1095
        %v1123 = vmul.f32 %v478, %v1095
        %v1124 = vmul.f32 %v479, %v1095
        %v1125 = vmul.f32 %v480, %v1095
        %v1126 = vmul.f32 %v531, %v441
        %v1127 = vmul.f32 %v515, %v442
        %v1128 = vmul.f32 %v532, %v441
        %v1129 = vmul.f32 %v516, %v442
        %v1130 = vmul.f32 %v533, %v441
        %v1131 = vmul.f32 %v517, %v442
        %v1132 = vmul.f32 %v534, %v441
        %v1133 = vmul.f32 %v518, %v442
        %v1134 = vmul.f32 %v535, %v441
        %v1135 = vmul.f32 %v519, %v442
        %v1136 = vmul.f32 %v536, %v441
        %v1137 = vmul.f32 %v520, %v442
        %v1138 = vmul.f32 %v537, %v441
        %v1139 = vmul.f32 %v521, %v442
        %v1140 = vmul.f32 %v538, %v441
        %v1141 = vmul.f32 %v522, %v442
        %v1142 = vmul.f32 %v539, %v441
        %v1143 = vmul.f32 %v523, %v442
        %v1144 = vmul.f32 %v540, %v441
        %v1145 = vmul.f32 %v524, %v442
        %v1146 = vmul.f32 %v541, %v441
        %v1147 = vmul.f32 %v525, %v442
        %v1148 = vmul.f32 %v542, %v441
        %v1149 = vmul.f32 %v526, %v442
        %v1150 = vmul.f32 %v543, %v441
        %v1151 = vmul.f32 %v527, %v442
        %v1152 = vmul.f32 %v544, %v441
        %v1153 = vmul.f32 %v528, %v442
        %v1154 = vmul.f32 %v545, %v441
        %v1155 = vmul.f32 %v529, %v442
        %v1156 = vadd.f32 %v1096, %v1126
        %v1157 = vadd.f32 %v1097, %v1127
        %v1158 = vadd.f32 %v1098, %v1128
        %v1159 = vadd.f32 %v1099, %v1129
        %v1160 = vadd.f32 %v1100, %v1130
        %v1161 = vadd.f32 %v1101, %v1131
        %v1162 = vadd.f32 %v1102, %v1132
        %v1163 = vadd.f32 %v1103, %v1133
        %v1164 = vadd.f32 %v1104, %v1134
        %v1165 = vadd.f32 %v1105, %v1135
        %v1166 = vadd.f32 %v1106, %v1136
        %v1167 = vadd.f32 %v1107, %v1137
        %v1168 = vadd.f32 %v1108, %v1138
        %v1169 = vadd.f32 %v1109, %v1139
        %v1170 = vadd.f32 %v1110, %v1140
        %v1171 = vadd.f32 %v1111, %v1141
        %v1172 = vadd.f32 %v1112, %v1142
        %v1173 = vadd.f32 %v1113, %v1143
        %v1174 = vadd.f32 %v1114, %v1144
        %v1175 = vadd.f32 %v1115, %v1145
        %v1176 = vadd.f32 %v1116, %v1146
        %v1177 = vadd.f32 %v1117, %v1147
        %v1178 = vadd.f32 %v1118, %v1148
        %v1179 = vadd.f32 %v1119, %v1149
        %v1180 = vadd.f32 %v1120, %v1150
        %v1181 = vadd.f32 %v1121, %v1151
        %v1182 = vadd.f32 %v1122, %v1152
        %v1183 = vadd.f32 %v1123, %v1153
        %v1184 = vadd.f32 %v1124, %v1154
        %v1185 = vadd.f32 %v1125, %v1155
        %v1186 = vmul.f32 %v580, %v447
        %v1187 = vmul.f32 %v596, %v448
        %v1188 = vmul.f32 %v581, %v447
        %v1189 = vmul.f32 %v597, %v448
        %v1190 = vmul.f32 %v582, %v447
        %v1191 = vmul.f32 %v598, %v448
        %v1192 = vmul.f32 %v583, %v447
        %v1193 = vmul.f32 %v599, %v448
        %v1194 = vmul.f32 %v584, %v447
        %v1195 = vmul.f32 %v600, %v448
        %v1196 = vmul.f32 %v585, %v447
        %v1197 = vmul.f32 %v601, %v448
        %v1198 = vmul.f32 %v586, %v447
        %v1199 = vmul.f32 %v602, %v448
        %v1200 = vmul.f32 %v587, %v447
        %v1201 = vmul.f32 %v603, %v448
        %v1202 = vmul.f32 %v588, %v447
        %v1203 = vmul.f32 %v604, %v448
        %v1204 = vmul.f32 %v589, %v447
        %v1205 = vmul.f32 %v605, %v448
        %v1206 = vmul.f32 %v590, %v447
        %v1207 = vmul.f32 %v606, %v448
        %v1208 = vmul.f32 %v591, %v447
        %v1209 = vmul.f32 %v607, %v448
        %v1210 = vmul.f32 %v592, %v447
        %v1211 = vmul.f32 %v608, %v448
        %v1212 = vmul.f32 %v593, %v447
        %v1213 = vmul.f32 %v609, %v448
        %v1214 = vmul.f32 %v594, %v447
        %v1215 = vmul.f32 %v610, %v448
        %v1216 = vadd.f32 %v1156, %v1186
        %v1217 = vadd.f32 %v1157, %v1187
        %v1218 = vadd.f32 %v1158, %v1188
        %v1219 = vadd.f32 %v1159, %v1189
        %v1220 = vadd.f32 %v1160, %v1190
        %v1221 = vadd.f32 %v1161, %v1191
        %v1222 = vadd.f32 %v1162, %v1192
        %v1223 = vadd.f32 %v1163, %v1193
        %v1224 = vadd.f32 %v1164, %v1194
        %v1225 = vadd.f32 %v1165, %v1195
        %v1226 = vadd.f32 %v1166, %v1196
        %v1227 = vadd.f32 %v1167, %v1197
        %v1228 = vadd.f32 %v1168, %v1198
        %v1229 = vadd.f32 %v1169, %v1199
        %v1230 = vadd.f32 %v1170, %v1200
        %v1231 = vadd.f32 %v1171, %v1201
        %v1232 = vadd.f32 %v1172, %v1202
        %v1233 = vadd.f32 %v1173, %v1203
        %v1234 = vadd.f32 %v1174, %v1204
        %v1235 = vadd.f32 %v1175, %v1205
        %v1236 = vadd.f32 %v1176, %v1206
        %v1237 = vadd.f32 %v1177, %v1207
        %v1238 = vadd.f32 %v1178, %v1208
        %v1239 = vadd.f32 %v1179, %v1209
        %v1240 = vadd.f32 %v1180, %v1210
        %v1241 = vadd.f32 %v1181, %v1211
        %v1242 = vadd.f32 %v1182, %v1212
        %v1243 = vadd.f32 %v1183, %v1213
        %v1244 = vadd.f32 %v1184, %v1214
        %v1245 = vadd.f32 %v1185, %v1215
        %v1246 = vld [vmem:[%s385] sm:$0xff]
        %v1247 = vld [vmem:[%s385 + $0x8] sm:$0xff]
        %v1248 = vld [vmem:[%s385 + $0x10] sm:$0xff]
        %v1249 = vld [vmem:[%s385 + $0x18] sm:$0xff]
        %v1250 = vld [vmem:[%s385 + $0x20] sm:$0xff]
        %v1251 = vld [vmem:[%s385 + $0x28] sm:$0xff]
        %v1252 = vld [vmem:[%s385 + $0x30] sm:$0xff]
        %v1253 = vld [vmem:[%s385 + $0x38] sm:$0xff]
        %v1254 = vld [vmem:[%s385 + $0x40] sm:$0xff]
        %v1255 = vld [vmem:[%s385 + $0x48] sm:$0xff]
        %v1256 = vld [vmem:[%s385 + $0x50] sm:$0xff]
        %v1257 = vld [vmem:[%s385 + $0x58] sm:$0xff]
        %v1258 = vld [vmem:[%s385 + $0x60] sm:$0xff]
        %v1259 = vld [vmem:[%s385 + $0x68] sm:$0xff]
        %v1260 = vld [vmem:[%s385 + $0x70] sm:$0xff]
        %v1261 = vld [vmem:[%s385 + $0x78] sm:$0xff]
        %v1262 = vld [vmem:[%s385 + $0x80] sm:$0xff]
        %v1263 = vld [vmem:[%s385 + $0x88] sm:$0xff]
        %v1264 = vld [vmem:[%s385 + $0x90] sm:$0xff]
        %v1265 = vld [vmem:[%s385 + $0x98] sm:$0xff]
        %v1266 = vld [vmem:[%s385 + $0xa0] sm:$0xff]
        %v1267 = vld [vmem:[%s385 + $0xa8] sm:$0xff]
        %v1268 = vld [vmem:[%s385 + $0xb0] sm:$0xff]
        %v1269 = vld [vmem:[%s385 + $0xb8] sm:$0xff]
        %v1270 = vld [vmem:[%s385 + $0xc0] sm:$0xff]
        %v1271 = vld [vmem:[%s385 + $0xc8] sm:$0xff]
        %v1272 = vld [vmem:[%s385 + $0xd0] sm:$0xff]
        %v1273 = vld [vmem:[%s385 + $0xd8] sm:$0xff]
        %v1274 = vld [vmem:[%s385 + $0xe0] sm:$0xff]
        %v1275 = vld [vmem:[%s385 + $0xe8] sm:$0xff]
        %v1276 = vadd.f32 %v1246, %v1216
        %v1277 = vadd.f32 %v1247, %v1217
        %v1278 = vadd.f32 %v1248, %v1218
        %v1279 = vadd.f32 %v1249, %v1219
        %v1280 = vadd.f32 %v1250, %v1220
        %v1281 = vadd.f32 %v1251, %v1221
        %v1282 = vadd.f32 %v1252, %v1222
        %v1283 = vadd.f32 %v1253, %v1223
        %v1284 = vadd.f32 %v1254, %v1224
        %v1285 = vadd.f32 %v1255, %v1225
        %v1286 = vadd.f32 %v1256, %v1226
        %v1287 = vadd.f32 %v1257, %v1227
        %v1288 = vadd.f32 %v1258, %v1228
        %v1289 = vadd.f32 %v1259, %v1229
        %v1290 = vadd.f32 %v1260, %v1230
        %v1291 = vadd.f32 %v1261, %v1231
        %v1292 = vadd.f32 %v1262, %v1232
        %v1293 = vadd.f32 %v1263, %v1233
        %v1294 = vadd.f32 %v1264, %v1234
        %v1295 = vadd.f32 %v1265, %v1235
        %v1296 = vadd.f32 %v1266, %v1236
        %v1297 = vadd.f32 %v1267, %v1237
        %v1298 = vadd.f32 %v1268, %v1238
        %v1299 = vadd.f32 %v1269, %v1239
        %v1300 = vadd.f32 %v1270, %v1240
        %v1301 = vadd.f32 %v1271, %v1241
        %v1302 = vadd.f32 %v1272, %v1242
        %v1303 = vadd.f32 %v1273, %v1243
        %v1304 = vadd.f32 %v1274, %v1244
        %v1305 = vadd.f32 %v1275, %v1245
        %1306 = vst.msk [vmem:[%s385] sm:$0xff] %vm814, %v1276
        %1307 = vst.msk [vmem:[%s385 + $0x8] sm:$0xff] %vm814, %v1277
        %1308 = vst.msk [vmem:[%s385 + $0x10] sm:$0xff] %vm814, %v1278
        %1309 = vst.msk [vmem:[%s385 + $0x18] sm:$0xff] %vm814, %v1279
        %1310 = vst.msk [vmem:[%s385 + $0x20] sm:$0xff] %vm814, %v1280
        %1311 = vst.msk [vmem:[%s385 + $0x28] sm:$0xff] %vm814, %v1281
        %1312 = vst.msk [vmem:[%s385 + $0x30] sm:$0xff] %vm814, %v1282
        %1313 = vst.msk [vmem:[%s385 + $0x38] sm:$0xff] %vm814, %v1283
        %1314 = vst.msk [vmem:[%s385 + $0x40] sm:$0xff] %vm814, %v1284
        %1315 = vst.msk [vmem:[%s385 + $0x48] sm:$0xff] %vm814, %v1285
        %1316 = vst.msk [vmem:[%s385 + $0x50] sm:$0xff] %vm814, %v1286
        %1317 = vst.msk [vmem:[%s385 + $0x58] sm:$0xff] %vm814, %v1287
        %1318 = vst.msk [vmem:[%s385 + $0x60] sm:$0xff] %vm814, %v1288
        %1319 = vst.msk [vmem:[%s385 + $0x68] sm:$0xff] %vm814, %v1289
        %1320 = vst.msk [vmem:[%s385 + $0x70] sm:$0xff] %vm814, %v1290
        %1321 = vst.msk [vmem:[%s385 + $0x78] sm:$0xff] %vm814, %v1291
        %1322 = vst.msk [vmem:[%s385 + $0x80] sm:$0xff] %vm814, %v1292
        %1323 = vst.msk [vmem:[%s385 + $0x88] sm:$0xff] %vm814, %v1293
        %1324 = vst.msk [vmem:[%s385 + $0x90] sm:$0xff] %vm814, %v1294
        %1325 = vst.msk [vmem:[%s385 + $0x98] sm:$0xff] %vm814, %v1295
        %1326 = vst.msk [vmem:[%s385 + $0xa0] sm:$0xff] %vm814, %v1296
        %1327 = vst.msk [vmem:[%s385 + $0xa8] sm:$0xff] %vm814, %v1297
        %1328 = vst.msk [vmem:[%s385 + $0xb0] sm:$0xff] %vm814, %v1298
        %1329 = vst.msk [vmem:[%s385 + $0xb8] sm:$0xff] %vm814, %v1299
        %1330 = vst.msk [vmem:[%s385 + $0xc0] sm:$0xff] %vm814, %v1300
        %1331 = vst.msk [vmem:[%s385 + $0xc8] sm:$0xff] %vm814, %v1301
        %1332 = vst.msk [vmem:[%s385 + $0xd0] sm:$0xff] %vm814, %v1302
        %1333 = vst.msk [vmem:[%s385 + $0xd8] sm:$0xff] %vm814, %v1303
        %1334 = vst.msk [vmem:[%s385 + $0xe0] sm:$0xff] %vm814, %v1304
        %1335 = vst.msk [vmem:[%s385 + $0xe8] sm:$0xff] %vm814, %v1305
        %p1336 = scmp.gt.s32.totalorder %s31, 0
        // Predicated region
        $region57: #{tpu_custom_call.1} parent=39 // pred_check
          %p1337 = pneg %p1336
        $region58: #{tpu_custom_call.1} parent=39 // pred_check_branch
          %1339 = sbr.rel (%p1337) target = $region60
        $region59: #{tpu_custom_call.1} parent=39 // pred_region
          %v1340 = vld [vmem:[%s327] sm:$0xff]
          %v1341 = vld [vmem:[%s327 + $0x8] sm:$0xff]
          %v1342 = vrot.slane %v1340, 7
          %v1343 = vrot.slane %v1341, 7
          %v1344 = vsel %vm513, %v1342, %v1343
          %v1345 = vsel %vm513, %v1343, %v1342
          %v1346 = vrot.slane %v1340, 1
          %v1347 = vrot.slane %v1341, 1
          %v1348 = vsel %vm578, %v1346, %v1347
          %v1349 = vsel %vm578, %v1347, %v1346
          %v1350 = vmul.f32 %v1340, %v850
          %v1351 = vmul.f32 %v1341, %v850
          %v1352 = vmul.f32 %v1345, %v413
          %v1353 = vmul.f32 %v1344, %v414
          %v1354 = vadd.f32 %v1350, %v1352
          %v1355 = vadd.f32 %v1351, %v1353
          %v1356 = vmul.f32 %v1348, %v423
          %v1357 = vmul.f32 %v1349, %v424
          %v1358 = vadd.f32 %v1354, %v1356
          %v1359 = vadd.f32 %v1355, %v1357
          %v1360 = vld [vmem:[%s385] sm:$0xff]
          %v1361 = vld [vmem:[%s385 + $0x8] sm:$0xff]
          %v1362 = vadd.f32 %v1360, %v1358
          %v1363 = vadd.f32 %v1361, %v1359
          %1364 = vst.msk [vmem:[%s385] sm:$0xff] %vm814, %v1362
          %1365 = vst.msk [vmem:[%s385 + $0x8] sm:$0xff] %vm814, %v1363
        $region60: #{tpu_custom_call.1} parent=39 // pred_fallthru
          _
        %p1366 = scmp.lt.s32.totalorder %s31, 0
        // Predicated region
        $region61: #{tpu_custom_call.1} parent=39 // pred_check
          %p1367 = pneg %p1366
        $region62: #{tpu_custom_call.1} parent=39 // pred_check_branch
          %1369 = sbr.rel (%p1367) target = $region64
        $region63: #{tpu_custom_call.1} parent=39 // pred_region
          %v1370 = vld [vmem:[%s345] sm:$0xff]
          %v1371 = vld [vmem:[%s345 + $0x8] sm:$0xff]
          %v1372 = vrot.slane %v1370, 7
          %v1373 = vrot.slane %v1371, 7
          %v1374 = vsel %vm513, %v1372, %v1373
          %v1375 = vsel %vm513, %v1373, %v1372
          %v1376 = vrot.slane %v1370, 1
          %v1377 = vrot.slane %v1371, 1
          %v1378 = vsel %vm578, %v1376, %v1377
          %v1379 = vsel %vm578, %v1377, %v1376
          %v1380 = vmul.f32 %v1370, %v1095
          %v1381 = vmul.f32 %v1371, %v1095
          %v1382 = vmul.f32 %v1375, %v441
          %v1383 = vmul.f32 %v1374, %v442
          %v1384 = vadd.f32 %v1380, %v1382
          %v1385 = vadd.f32 %v1381, %v1383
          %v1386 = vmul.f32 %v1378, %v447
          %v1387 = vmul.f32 %v1379, %v448
          %v1388 = vadd.f32 %v1384, %v1386
          %v1389 = vadd.f32 %v1385, %v1387
          %s1390 = scalar_lea.vmem %s385, 240 [#allocation10]
          %v1391 = vld [vmem:[%s1390] sm:$0xff]
          %v1392 = vld [vmem:[%s1390 + $0x8] sm:$0xff]
          %v1393 = vadd.f32 %v1391, %v1388
          %v1394 = vadd.f32 %v1392, %v1389
          %1395 = vst.msk [vmem:[%s1390] sm:$0xff] %vm814, %v1393
          %1396 = vst.msk [vmem:[%s1390 + $0x8] sm:$0xff] %vm814, %v1394
        $region64: #{tpu_custom_call.1} parent=39 // pred_fallthru
          _
        %s1397 = sand.u32 %s190, 1
        %s1398 = scalar_lea.sflag [#allocation4], %s1397
        %s1399 = sand.u32 %s190, 1
        %s1400 = smul.addr %s1399, 256
        %s1401 = scalar_lea.vmem [#allocation10], %s1400
        // Predicated region
        $region65: #{tpu_custom_call.1} parent=39 // pred_check
          %p1402 = pneg %p200
        $region66: #{tpu_custom_call.1} parent=39 // pred_check_branch
          %1404 = sbr.rel (%p1402) target = $region68
        $region67: #{tpu_custom_call.1} parent=39 // pred_region
          %s1405 = smul.u32 16, %s31
          %s1407 = ssub.s32 4096, 4096
          %1408 = vsyncadd %s1398, %s1407
          %s1409 = smul.addr %s1405, 2
          %s1410 = smul.addr %s30, 32
          %s1411 = sadd.s32 %s1409, %s1410
          %s1412 = smul.addr %s1411, 128
          %s1413 = scalar_lea.hbm %s5, %s1412
          %s1414 = sshll.u32 %s1401, 4
          %s1415 = int_to_ptr.vmem [resolvable:$true] %s1414
          %1420 = dma.vmem_to_hbm [thread:$0]  %s1415, 4096, %s1413, %s1398, 128, 128, 8
        $region68: #{tpu_custom_call.1} parent=39 // pred_fallthru
          _
      $region40: #{tpu_custom_call.1} parent=5 // pred_fallthru
        _
      %p1421 = scmp.le.s32.totalorder 2, %s21
      // Predicated region
      $region69: #{tpu_custom_call.1} parent=5 // pred_check
        %p1422 = pneg %p1421
      $region70: #{tpu_custom_call.1} parent=5 // pred_check_branch
        %1424 = sbr.rel (%p1422) target = $region72
      $region71: #{tpu_custom_call.1} parent=5 // pred_region
        %s1425 = ssub.s32 %s21, 2
        // Predicated region
        $region73: #{tpu_custom_call.1} parent=71 // pred_check
          %p1426 = pneg %p206
        $region74: #{tpu_custom_call.1} parent=71 // pred_check_branch
          %1428 = sbr.rel (%p1426) target = $region76
        $region75: #{tpu_custom_call.1} parent=71 // pred_region
          %s1429 = sand.u32 %s191, 1
          %s1430 = scalar_lea.sflag [#allocation4], %s1429
          %s1431 = sand.u32 %s191, 1
          %s1432 = smul.addr %s1431, 256
          %s1433 = scalar_lea.vmem [#allocation10], %s1432
          %1434 = dma.done %s1430, 4096
        $region76: #{tpu_custom_call.1} parent=71 // pred_fallthru
          _
      $region72: #{tpu_custom_call.1} parent=5 // pred_fallthru
        _
    $region6: #{tpu_custom_call.1} parent=1 // loop_footer
      %s25 = sadd.s32 1, %s21
    $region7: #{tpu_custom_call.1} parent=1 // loop_footer_branch
      %20 = sbr.rel target = $region3
    $region8: #{tpu_custom_call.1} parent=1 // loop_exit
      _
    %1435 = vsyncpa [#allocation3], 1
    %s1436 = scalar_lea.sflag [#allocation3], 1
    %1437 = vsyncpa %s1436, 1
    %1438 = vsyncpa [#allocation6], 1
    %s1439 = scalar_lea.sflag [#allocation6], 1
    %1440 = vsyncpa %s1439, 1
    %1441 = vsyncpa [#allocation9], 1
    %1442 = vsyncpa [#allocation4], 1
    %s1443 = scalar_lea.sflag [#allocation4], 1
    %1444 = vsyncpa %s1443, 1

</llo_original>
